<compile_context>
chip_gen: v5e
topology: v5e:2x2
jax: 0.10.0
libtpu: 0.0.40
codegen_flags: <defaults>
</compile_context>

<pallas_src>
import math

import jax
import jax.numpy as jnp
from jax.experimental import pallas as pl
from jax.experimental.pallas import tpu as pltpu  # noqa: F401  (kept for TPU-specific tuning hooks)

# ------------------------- synthetic "roberta-tiny" config -------------------------
B, C, S = 2, 2, 8          # batch, num_choices, seq_len
H, NH, DH = 32, 2, 16      # hidden, heads, head_dim
INTER = 64                 # intermediate (FFN) size
LAYERS = 2
VOCAB = 100
PAD = 1                    # RoBERTa padding_idx
MAXPOS = S + PAD + 2       # position-embedding table size
EPS = 1e-5
NSEQ = B * C               # number of independent sequences
TOK = NSEQ * S             # total tokens

# MXU operand dtype.  Keep f32 at this toy scale for exact parity with the reference;
# set to jnp.bfloat16 on v6e/v7x for real configs (LN/softmax stay f32 either way).
MXU_DTYPE = jnp.float32


def _mm(a, b):
    """2-D MXU matmul with f32 accumulation."""
    return jnp.dot(a.astype(MXU_DTYPE), b.astype(MXU_DTYPE),
                   preferred_element_type=jnp.float32)


def _ln(x, g, b):
    mu = jnp.mean(x, axis=-1, keepdims=True)
    xc = x - mu
    var = jnp.mean(xc * xc, axis=-1, keepdims=True)
    return xc * jax.lax.rsqrt(var + EPS) * g + b


# ------------------------------ fused forward kernel --------------------------------
def _roberta_fwd_kernel(
    emb_ref, bias_ref,                                    # activations / mask
    eg_ref, eb_ref,                                        # embedding LayerNorm
    wqkv_ref, bqkv_ref, wo_ref, bo_ref, g1_ref, b1_ref,    # attention block (stacked over layers)
    wi_ref, bi_ref, wo2_ref, bo2_ref, g2_ref, b2_ref,      # FFN block (stacked over layers)
    pw_ref, pb_ref, cw_ref, cb_ref,                        # pooler + classifier
    out_ref,
):
    # embedding LayerNorm
    x = _ln(emb_ref[...], eg_ref[...], eb_ref[...])        # (TOK, H)
    bias = bias_ref[...]                                    # (NSEQ, S, S) additive key mask

    for l in range(LAYERS):                                 # static unroll, LAYERS=2
        # ---- self-attention: fused QKV projection (scale folded into Q at init) ----
        qkv = _mm(x, wqkv_ref[l]) + bqkv_ref[l]             # (TOK, 3H)
        wo_l = wo_ref[l]                                     # (H, H)

        attn = None
        for h in range(NH):                                  # static unroll, NH=2
            qh = qkv[:, h * DH:(h + 1) * DH].reshape(NSEQ, S, DH)
            kh = qkv[:, H + h * DH:H + (h + 1) * DH].reshape(NSEQ, S, DH)
            vh = qkv[:, 2 * H + h * DH:2 * H + (h + 1) * DH].reshape(NSEQ, S, DH)

            sc = jnp.einsum('bqd,bkd->bqk',
                            qh.astype(MXU_DTYPE), kh.astype(MXU_DTYPE),
                            preferred_element_type=jnp.float32)          # (NSEQ, S, S)
            sc = sc + bias
            sc = sc - jnp.max(sc, axis=-1, keepdims=True)
            p = jnp.exp(sc)
            p = p * pl.reciprocal(jnp.sum(p, axis=-1, keepdims=True), approx=True)
            ctx = jnp.einsum('bqk,bkd->bqd',
                             p.astype(MXU_DTYPE), vh.astype(MXU_DTYPE),
                             preferred_element_type=jnp.float32)          # (NSEQ, S, DH)

            # fold head-concat + output projection: ctx_h @ Wo[h*DH:(h+1)*DH, :]
            term = _mm(ctx.reshape(TOK, DH), wo_l[h * DH:(h + 1) * DH, :])
            attn = term if attn is None else attn + term

        x = _ln(attn + bo_ref[l] + x, g1_ref[l], b1_ref[l])

        # ---- feed-forward ----
        inter = _mm(x, wi_ref[l]) + bi_ref[l]
        # TODO(synk): HF roberta uses exact erf-GELU; tanh approximation kept for Mosaic lowering safety.
        inter = jax.nn.gelu(inter, approximate=True)
        ffn = _mm(inter, wo2_ref[l]) + bo2_ref[l]
        x = _ln(ffn + x, g2_ref[l], b2_ref[l])

    # ---- pooler (first token of each sequence) + classifier (dropout = identity) ----
    cls_tok = x.reshape(NSEQ, S, H)[:, 0, :]                # (NSEQ, H)
    pooled = jnp.tanh(_mm(cls_tok, pw_ref[...]) + pb_ref[...])
    # (NSEQ, 1) is the only lane-sparse store left in the whole forward.
    out_ref[...] = _mm(pooled, cw_ref[...]) + cb_ref[...]


# ----------------------------- model wrapper (JAX glue) ------------------------------
@jax.jit
def roberta_multiple_choice(params, input_ids, attention_mask):
    b, c, s = input_ids.shape
    nseq = b * c
    flat_ids = input_ids.reshape(nseq, s)
    flat_mask = attention_mask.reshape(nseq, s).astype(jnp.float32)

    # RoBERTa position ids: padding-aware cumulative positions offset by padding_idx
    not_pad = (flat_ids != PAD).astype(jnp.int32)
    pos_ids = jnp.cumsum(not_pad, axis=-1) * not_pad + PAD

    # embedding gathers (glue)
    emb = (params["word_emb"][flat_ids]
           + params["pos_emb"][pos_ids]
           + params["type_emb"][jnp.zeros_like(flat_ids)])
    emb = emb.reshape(nseq * s, H).astype(jnp.float32)

    # additive attention mask over key positions, pre-broadcast to score shape
    key_bias = (1.0 - flat_mask) * -1e9                      # (nseq, s)
    bias = jnp.broadcast_to(key_bias[:, None, :], (nseq, s, s))

    logits = pl.pallas_call(
        _roberta_fwd_kernel,
        out_shape=jax.ShapeDtypeStruct((nseq, 1), jnp.float32),
    )(
        emb, bias,
        params["emb_ln_g"], params["emb_ln_b"],
        params["wqkv"], params["bqkv"], params["wo"], params["bo"],
        params["ln1_g"], params["ln1_b"],
        params["wi"], params["bi"], params["wo2"], params["bo2"],
        params["ln2_g"], params["ln2_b"],
        params["pool_w"], params["pool_b"], params["cls_w"], params["cls_b"],
    )
    return logits.reshape(b, c)


# --------------------------------- parameter init ------------------------------------
def init_params(key):
    def dense(k, fi, fo):
        return (jax.random.normal(k, (fi, fo), jnp.float32) * 0.02,
                jnp.zeros((fo,), jnp.float32))

    keys = jax.random.split(key, 8 + LAYERS)
    params = {
        "word_emb": jax.random.normal(keys[0], (VOCAB, H), jnp.float32) * 0.02,
        "pos_emb": jax.random.normal(keys[1], (MAXPOS, H), jnp.float32) * 0.02,
        "type_emb": jax.random.normal(keys[2], (1, H), jnp.float32) * 0.02,
        "emb_ln_g": jnp.ones((1, H), jnp.float32),
        "emb_ln_b": jnp.zeros((1, H), jnp.float32),
    }

    scale = 1.0 / math.sqrt(DH)
    wqkv, bqkv, wo, bo, g1, b1 = [], [], [], [], [], []
    wi, bi, wo2, bo2, g2, b2 = [], [], [], [], [], []
    for li in range(LAYERS):
        lk = jax.random.split(keys[3 + li], 6)
        wq, bq_ = dense(lk[0], H, H)
        wk, bk_ = dense(lk[1], H, H)
        wv, bv_ = dense(lk[2], H, H)
        # fused QKV weight; fold the 1/sqrt(DH) attention scale into the Q slice
        wqkv.append(jnp.concatenate([wq * scale, wk, wv], axis=1))       # (H, 3H)
        bqkv.append(jnp.concatenate([bq_ * scale, bk_, bv_]).reshape(1, 3 * H))
        w, bw = dense(lk[3], H, H);      wo.append(w);  bo.append(bw.reshape(1, H))
        w, bw = dense(lk[4], H, INTER);  wi.append(w);  bi.append(bw.reshape(1, INTER))
        w, bw = dense(lk[5], INTER, H);  wo2.append(w); bo2.append(bw.reshape(1, H))
        g1.append(jnp.ones((1, H), jnp.float32)); b1.append(jnp.zeros((1, H), jnp.float32))
        g2.append(jnp.ones((1, H), jnp.float32)); b2.append(jnp.zeros((1, H), jnp.float32))

    for name, lst in [("wqkv", wqkv), ("bqkv", bqkv), ("wo", wo), ("bo", bo),
                      ("ln1_g", g1), ("ln1_b", b1), ("wi", wi), ("bi", bi),
                      ("wo2", wo2), ("bo2", bo2), ("ln2_g", g2), ("ln2_b", b2)]:
        params[name] = jnp.stack(lst, axis=0)

    pw, pb = dense(keys[3 + LAYERS], H, H)
    params["pool_w"], params["pool_b"] = pw, pb.reshape(1, H)
    cw, cb = dense(keys[4 + LAYERS], H, 1)
    params["cls_w"], params["cls_b"] = cw, cb.reshape(1, 1)
    return params


# -------------------------------------- main -----------------------------------------
if __name__ == "__main__":
    key = jax.random.PRNGKey(0)
    pkey, ikey = jax.random.split(key)
    params = init_params(pkey)

    input_ids = jax.random.randint(ikey, (B, C, S), minval=3, maxval=VOCAB, dtype=jnp.int32)
    attention_mask = jnp.ones((B, C, S), jnp.int32)
    # pad out the last two tokens of one choice to exercise the mask path
    input_ids = input_ids.at[0, 1, -2:].set(PAD)
    attention_mask = attention_mask.at[0, 1, -2:].set(0)

    logits = roberta_multiple_choice(params, input_ids, attention_mask)
    logits = jax.block_until_ready(logits)
    assert logits.shape == (B, C) and bool(jnp.all(jnp.isfinite(logits)))
    print("KERNEL_OK")
</pallas_src>

<mosaic_0001>
module attributes {stable_mosaic.version = 11 : i64} {
  func.func @_roberta_fwd_kernel(%arg0: memref<32x32xf32, #tpu.memory_space<vmem>>, %arg1: memref<4x8x8xf32, #tpu.memory_space<vmem>>, %arg2: memref<1x32xf32, #tpu.memory_space<vmem>>, %arg3: memref<1x32xf32, #tpu.memory_space<vmem>>, %arg4: memref<2x32x96xf32, #tpu.memory_space<vmem>>, %arg5: memref<2x1x96xf32, #tpu.memory_space<vmem>>, %arg6: memref<2x32x32xf32, #tpu.memory_space<vmem>>, %arg7: memref<2x1x32xf32, #tpu.memory_space<vmem>>, %arg8: memref<2x1x32xf32, #tpu.memory_space<vmem>>, %arg9: memref<2x1x32xf32, #tpu.memory_space<vmem>>, %arg10: memref<2x32x64xf32, #tpu.memory_space<vmem>>, %arg11: memref<2x1x64xf32, #tpu.memory_space<vmem>>, %arg12: memref<2x64x32xf32, #tpu.memory_space<vmem>>, %arg13: memref<2x1x32xf32, #tpu.memory_space<vmem>>, %arg14: memref<2x1x32xf32, #tpu.memory_space<vmem>>, %arg15: memref<2x1x32xf32, #tpu.memory_space<vmem>>, %arg16: memref<32x32xf32, #tpu.memory_space<vmem>>, %arg17: memref<1x32xf32, #tpu.memory_space<vmem>>, %arg18: memref<32x1xf32, #tpu.memory_space<vmem>>, %arg19: memref<1x1xf32, #tpu.memory_space<vmem>>, %arg20: memref<4x1xf32, #tpu.memory_space<vmem>>) attributes {dimension_semantics = [], scalar_prefetch = 0 : i64, scratch_operands = 0 : i64, tpu.core_type = #tpu.core_type<tc>} {
    %c0 = arith.constant 0 : index
    %c0_0 = arith.constant 0 : index
    %0 = vector.load %arg0[%c0, %c0_0] : memref<32x32xf32, #tpu.memory_space<vmem>>, vector<32x32xf32>
    %c0_1 = arith.constant 0 : index
    %c0_2 = arith.constant 0 : index
    %1 = vector.load %arg2[%c0_1, %c0_2] : memref<1x32xf32, #tpu.memory_space<vmem>>, vector<1x32xf32>
    %c0_3 = arith.constant 0 : index
    %c0_4 = arith.constant 0 : index
    %2 = vector.load %arg3[%c0_3, %c0_4] : memref<1x32xf32, #tpu.memory_space<vmem>>, vector<1x32xf32>
    %cst = arith.constant dense<0.000000e+00> : vector<32xf32>
    %3 = vector.multi_reduction <add>, %0, %cst [1] : vector<32x32xf32> to vector<32xf32>
    %4 = vector.shape_cast %3 : vector<32xf32> to vector<32x1xf32>
    %cst_5 = arith.constant 3.200000e+01 : f32
    %5 = vector.broadcast %cst_5 : f32 to vector<32x1xf32>
    %6 = arith.divf %4, %5 : vector<32x1xf32>
    %7 = vector.broadcast %6 : vector<32x1xf32> to vector<32x32xf32>
    %8 = arith.subf %0, %7 : vector<32x32xf32>
    %9 = arith.mulf %8, %8 : vector<32x32xf32>
    %cst_6 = arith.constant dense<0.000000e+00> : vector<32xf32>
    %10 = vector.multi_reduction <add>, %9, %cst_6 [1] : vector<32x32xf32> to vector<32xf32>
    %11 = vector.shape_cast %10 : vector<32xf32> to vector<32x1xf32>
    %cst_7 = arith.constant 3.200000e+01 : f32
    %12 = vector.broadcast %cst_7 : f32 to vector<32x1xf32>
    %13 = arith.divf %11, %12 : vector<32x1xf32>
    %cst_8 = arith.constant 9.99999974E-6 : f32
    %14 = vector.broadcast %cst_8 : f32 to vector<32x1xf32>
    %15 = arith.addf %13, %14 : vector<32x1xf32>
    %16 = math.rsqrt %15 : vector<32x1xf32>
    %17 = vector.broadcast %16 : vector<32x1xf32> to vector<32x32xf32>
    %18 = arith.mulf %8, %17 : vector<32x32xf32>
    %19 = vector.broadcast %1 : vector<1x32xf32> to vector<32x32xf32>
    %20 = arith.mulf %18, %19 : vector<32x32xf32>
    %21 = vector.broadcast %2 : vector<1x32xf32> to vector<32x32xf32>
    %22 = arith.addf %20, %21 : vector<32x32xf32>
    %c0_9 = arith.constant 0 : index
    %c0_10 = arith.constant 0 : index
    %c0_11 = arith.constant 0 : index
    %23 = vector.load %arg1[%c0_9, %c0_10, %c0_11] : memref<4x8x8xf32, #tpu.memory_space<vmem>>, vector<4x8x8xf32>
    %c0_12 = arith.constant 0 : index
    %c0_13 = arith.constant 0 : index
    %c0_14 = arith.constant 0 : index
    %24 = vector.load %arg4[%c0_12, %c0_13, %c0_14] : memref<2x32x96xf32, #tpu.memory_space<vmem>>, vector<1x32x96xf32>
    %25 = vector.shape_cast %24 : vector<1x32x96xf32> to vector<32x96xf32>
    %cst_15 = arith.constant dense<0.000000e+00> : vector<32x96xf32>
    %26 = tpu.matmul %22, %25, %cst_15 {dimension_numbers = #tpu.dot_dimension_numbers<[1], [0], [0], [1], [0, 0, 1, 1], [], []>} : vector<32x32xf32>, vector<32x96xf32>, vector<32x96xf32> -> vector<32x96xf32>
    %c0_16 = arith.constant 0 : index
    %c0_17 = arith.constant 0 : index
    %c0_18 = arith.constant 0 : index
    %27 = vector.load %arg5[%c0_16, %c0_17, %c0_18] : memref<2x1x96xf32, #tpu.memory_space<vmem>>, vector<1x1x96xf32>
    %28 = vector.shape_cast %27 : vector<1x1x96xf32> to vector<1x96xf32>
    %29 = vector.broadcast %28 : vector<1x96xf32> to vector<32x96xf32>
    %30 = arith.addf %26, %29 : vector<32x96xf32>
    %c0_19 = arith.constant 0 : index
    %c0_20 = arith.constant 0 : index
    %c0_21 = arith.constant 0 : index
    %31 = vector.load %arg6[%c0_19, %c0_20, %c0_21] : memref<2x32x32xf32, #tpu.memory_space<vmem>>, vector<1x32x32xf32>
    %32 = vector.shape_cast %31 : vector<1x32x32xf32> to vector<32x32xf32>
    %33 = vector.extract_strided_slice %30 {offsets = [0, 0], sizes = [32, 16], strides = [1, 1]} : vector<32x96xf32> to vector<32x16xf32>
    %34 = vector.shape_cast %33 : vector<32x16xf32> to vector<4x8x16xf32>
    %35 = vector.extract_strided_slice %30 {offsets = [0, 32], sizes = [32, 16], strides = [1, 1]} : vector<32x96xf32> to vector<32x16xf32>
    %36 = vector.shape_cast %35 : vector<32x16xf32> to vector<4x8x16xf32>
    %37 = vector.extract_strided_slice %30 {offsets = [0, 64], sizes = [32, 16], strides = [1, 1]} : vector<32x96xf32> to vector<32x16xf32>
    %38 = vector.shape_cast %37 : vector<32x16xf32> to vector<4x8x16xf32>
    "tpu.trace_start"() <{level = 10 : i32, message = "bqd,bkd->bqk"}> : () -> ()
    %cst_22 = arith.constant dense<0.000000e+00> : vector<4x8x8xf32>
    %39 = tpu.matmul %34, %36, %cst_22 {dimension_numbers = #tpu.dot_dimension_numbers<[2], [2], [1], [1], [0, 0, 0, 1, 1, 1], [0], [0]>} : vector<4x8x16xf32>, vector<4x8x16xf32>, vector<4x8x8xf32> -> vector<4x8x8xf32>
    "tpu.trace_stop"() : () -> ()
    %40 = arith.addf %39, %23 : vector<4x8x8xf32>
    %cst_23 = arith.constant dense<0xFF800000> : vector<4x8xf32>
    %41 = vector.multi_reduction <maximumf>, %40, %cst_23 [2] : vector<4x8x8xf32> to vector<4x8xf32>
    %42 = vector.shape_cast %41 : vector<4x8xf32> to vector<4x8x1xf32>
    %43 = vector.broadcast %42 : vector<4x8x1xf32> to vector<4x8x8xf32>
    %44 = arith.subf %40, %43 : vector<4x8x8xf32>
    %45 = math.exp %44 : vector<4x8x8xf32>
    %cst_24 = arith.constant dense<0.000000e+00> : vector<4x8xf32>
    %46 = vector.multi_reduction <add>, %45, %cst_24 [2] : vector<4x8x8xf32> to vector<4x8xf32>
    %47 = vector.shape_cast %46 : vector<4x8xf32> to vector<4x8x1xf32>
    %48 = tpu.reciprocal %47 {approx = true} : vector<4x8x1xf32> -> vector<4x8x1xf32>
    %49 = vector.broadcast %48 : vector<4x8x1xf32> to vector<4x8x8xf32>
    %50 = arith.mulf %45, %49 : vector<4x8x8xf32>
    "tpu.trace_start"() <{level = 10 : i32, message = "bqk,bkd->bqd"}> : () -> ()
    %cst_25 = arith.constant dense<0.000000e+00> : vector<4x8x16xf32>
    %51 = tpu.matmul %50, %38, %cst_25 {dimension_numbers = #tpu.dot_dimension_numbers<[2], [1], [1], [2], [0, 0, 0, 1, 1, 2], [0], [0]>} : vector<4x8x8xf32>, vector<4x8x16xf32>, vector<4x8x16xf32> -> vector<4x8x16xf32>
    "tpu.trace_stop"() : () -> ()
    %52 = vector.shape_cast %51 : vector<4x8x16xf32> to vector<32x16xf32>
    %53 = vector.extract_strided_slice %32 {offsets = [0, 0], sizes = [16, 32], strides = [1, 1]} : vector<32x32xf32> to vector<16x32xf32>
    %cst_26 = arith.constant dense<0.000000e+00> : vector<32x32xf32>
    %54 = tpu.matmul %52, %53, %cst_26 {dimension_numbers = #tpu.dot_dimension_numbers<[1], [0], [0], [1], [0, 0, 1, 1], [], []>} : vector<32x16xf32>, vector<16x32xf32>, vector<32x32xf32> -> vector<32x32xf32>
    %55 = vector.extract_strided_slice %30 {offsets = [0, 16], sizes = [32, 16], strides = [1, 1]} : vector<32x96xf32> to vector<32x16xf32>
    %56 = vector.shape_cast %55 : vector<32x16xf32> to vector<4x8x16xf32>
    %57 = vector.extract_strided_slice %30 {offsets = [0, 48], sizes = [32, 16], strides = [1, 1]} : vector<32x96xf32> to vector<32x16xf32>
    %58 = vector.shape_cast %57 : vector<32x16xf32> to vector<4x8x16xf32>
    %59 = vector.extract_strided_slice %30 {offsets = [0, 80], sizes = [32, 16], strides = [1, 1]} : vector<32x96xf32> to vector<32x16xf32>
    %60 = vector.shape_cast %59 : vector<32x16xf32> to vector<4x8x16xf32>
    "tpu.trace_start"() <{level = 10 : i32, message = "bqd,bkd->bqk"}> : () -> ()
    %cst_27 = arith.constant dense<0.000000e+00> : vector<4x8x8xf32>
    %61 = tpu.matmul %56, %58, %cst_27 {dimension_numbers = #tpu.dot_dimension_numbers<[2], [2], [1], [1], [0, 0, 0, 1, 1, 1], [0], [0]>} : vector<4x8x16xf32>, vector<4x8x16xf32>, vector<4x8x8xf32> -> vector<4x8x8xf32>
    "tpu.trace_stop"() : () -> ()
    %62 = arith.addf %61, %23 : vector<4x8x8xf32>
    %cst_28 = arith.constant dense<0xFF800000> : vector<4x8xf32>
    %63 = vector.multi_reduction <maximumf>, %62, %cst_28 [2] : vector<4x8x8xf32> to vector<4x8xf32>
    %64 = vector.shape_cast %63 : vector<4x8xf32> to vector<4x8x1xf32>
    %65 = vector.broadcast %64 : vector<4x8x1xf32> to vector<4x8x8xf32>
    %66 = arith.subf %62, %65 : vector<4x8x8xf32>
    %67 = math.exp %66 : vector<4x8x8xf32>
    %cst_29 = arith.constant dense<0.000000e+00> : vector<4x8xf32>
    %68 = vector.multi_reduction <add>, %67, %cst_29 [2] : vector<4x8x8xf32> to vector<4x8xf32>
    %69 = vector.shape_cast %68 : vector<4x8xf32> to vector<4x8x1xf32>
    %70 = tpu.reciprocal %69 {approx = true} : vector<4x8x1xf32> -> vector<4x8x1xf32>
    %71 = vector.broadcast %70 : vector<4x8x1xf32> to vector<4x8x8xf32>
    %72 = arith.mulf %67, %71 : vector<4x8x8xf32>
    "tpu.trace_start"() <{level = 10 : i32, message = "bqk,bkd->bqd"}> : () -> ()
    %cst_30 = arith.constant dense<0.000000e+00> : vector<4x8x16xf32>
    %73 = tpu.matmul %72, %60, %cst_30 {dimension_numbers = #tpu.dot_dimension_numbers<[2], [1], [1], [2], [0, 0, 0, 1, 1, 2], [0], [0]>} : vector<4x8x8xf32>, vector<4x8x16xf32>, vector<4x8x16xf32> -> vector<4x8x16xf32>
    "tpu.trace_stop"() : () -> ()
    %74 = vector.shape_cast %73 : vector<4x8x16xf32> to vector<32x16xf32>
    %75 = vector.extract_strided_slice %32 {offsets = [16, 0], sizes = [16, 32], strides = [1, 1]} : vector<32x32xf32> to vector<16x32xf32>
    %cst_31 = arith.constant dense<0.000000e+00> : vector<32x32xf32>
    %76 = tpu.matmul %74, %75, %cst_31 {dimension_numbers = #tpu.dot_dimension_numbers<[1], [0], [0], [1], [0, 0, 1, 1], [], []>} : vector<32x16xf32>, vector<16x32xf32>, vector<32x32xf32> -> vector<32x32xf32>
    %77 = arith.addf %54, %76 : vector<32x32xf32>
    %c0_32 = arith.constant 0 : index
    %c0_33 = arith.constant 0 : index
    %c0_34 = arith.constant 0 : index
    %78 = vector.load %arg7[%c0_32, %c0_33, %c0_34] : memref<2x1x32xf32, #tpu.memory_space<vmem>>, vector<1x1x32xf32>
    %79 = vector.shape_cast %78 : vector<1x1x32xf32> to vector<1x32xf32>
    %80 = vector.broadcast %79 : vector<1x32xf32> to vector<32x32xf32>
    %81 = arith.addf %77, %80 : vector<32x32xf32>
    %82 = arith.addf %81, %22 : vector<32x32xf32>
    %c0_35 = arith.constant 0 : index
    %c0_36 = arith.constant 0 : index
    %c0_37 = arith.constant 0 : index
    %83 = vector.load %arg8[%c0_35, %c0_36, %c0_37] : memref<2x1x32xf32, #tpu.memory_space<vmem>>, vector<1x1x32xf32>
    %84 = vector.shape_cast %83 : vector<1x1x32xf32> to vector<1x32xf32>
    %c0_38 = arith.constant 0 : index
    %c0_39 = arith.constant 0 : index
    %c0_40 = arith.constant 0 : index
    %85 = vector.load %arg9[%c0_38, %c0_39, %c0_40] : memref<2x1x32xf32, #tpu.memory_space<vmem>>, vector<1x1x32xf32>
    %86 = vector.shape_cast %85 : vector<1x1x32xf32> to vector<1x32xf32>
    %cst_41 = arith.constant dense<0.000000e+00> : vector<32xf32>
    %87 = vector.multi_reduction <add>, %82, %cst_41 [1] : vector<32x32xf32> to vector<32xf32>
    %88 = vector.shape_cast %87 : vector<32xf32> to vector<32x1xf32>
    %cst_42 = arith.constant 3.200000e+01 : f32
    %89 = vector.broadcast %cst_42 : f32 to vector<32x1xf32>
    %90 = arith.divf %88, %89 : vector<32x1xf32>
    %91 = vector.broadcast %90 : vector<32x1xf32> to vector<32x32xf32>
    %92 = arith.subf %82, %91 : vector<32x32xf32>
    %93 = arith.mulf %92, %92 : vector<32x32xf32>
    %cst_43 = arith.constant dense<0.000000e+00> : vector<32xf32>
    %94 = vector.multi_reduction <add>, %93, %cst_43 [1] : vector<32x32xf32> to vector<32xf32>
    %95 = vector.shape_cast %94 : vector<32xf32> to vector<32x1xf32>
    %cst_44 = arith.constant 3.200000e+01 : f32
    %96 = vector.broadcast %cst_44 : f32 to vector<32x1xf32>
    %97 = arith.divf %95, %96 : vector<32x1xf32>
    %cst_45 = arith.constant 9.99999974E-6 : f32
    %98 = vector.broadcast %cst_45 : f32 to vector<32x1xf32>
    %99 = arith.addf %97, %98 : vector<32x1xf32>
    %100 = math.rsqrt %99 : vector<32x1xf32>
    %101 = vector.broadcast %100 : vector<32x1xf32> to vector<32x32xf32>
    %102 = arith.mulf %92, %101 : vector<32x32xf32>
    %103 = vector.broadcast %84 : vector<1x32xf32> to vector<32x32xf32>
    %104 = arith.mulf %102, %103 : vector<32x32xf32>
    %105 = vector.broadcast %86 : vector<1x32xf32> to vector<32x32xf32>
    %106 = arith.addf %104, %105 : vector<32x32xf32>
    %c0_46 = arith.constant 0 : index
    %c0_47 = arith.constant 0 : index
    %c0_48 = arith.constant 0 : index
    %107 = vector.load %arg10[%c0_46, %c0_47, %c0_48] : memref<2x32x64xf32, #tpu.memory_space<vmem>>, vector<1x32x64xf32>
    %108 = vector.shape_cast %107 : vector<1x32x64xf32> to vector<32x64xf32>
    %cst_49 = arith.constant dense<0.000000e+00> : vector<32x64xf32>
    %109 = tpu.matmul %106, %108, %cst_49 {dimension_numbers = #tpu.dot_dimension_numbers<[1], [0], [0], [1], [0, 0, 1, 1], [], []>} : vector<32x32xf32>, vector<32x64xf32>, vector<32x64xf32> -> vector<32x64xf32>
    %c0_50 = arith.constant 0 : index
    %c0_51 = arith.constant 0 : index
    %c0_52 = arith.constant 0 : index
    %110 = vector.load %arg11[%c0_50, %c0_51, %c0_52] : memref<2x1x64xf32, #tpu.memory_space<vmem>>, vector<1x1x64xf32>
    %111 = vector.shape_cast %110 : vector<1x1x64xf32> to vector<1x64xf32>
    %112 = vector.broadcast %111 : vector<1x64xf32> to vector<32x64xf32>
    %113 = arith.addf %109, %112 : vector<32x64xf32>
    %114 = arith.mulf %113, %113 : vector<32x64xf32>
    %115 = arith.mulf %113, %114 : vector<32x64xf32>
    %cst_53 = arith.constant 4.471500e-02 : f32
    %116 = vector.broadcast %cst_53 : f32 to vector<32x64xf32>
    %117 = arith.mulf %116, %115 : vector<32x64xf32>
    %118 = arith.addf %113, %117 : vector<32x64xf32>
    %cst_54 = arith.constant 0.797884583 : f32
    %119 = vector.broadcast %cst_54 : f32 to vector<32x64xf32>
    %120 = arith.mulf %119, %118 : vector<32x64xf32>
    %121 = math.tanh %120 : vector<32x64xf32>
    %cst_55 = arith.constant 1.000000e+00 : f32
    %122 = vector.broadcast %cst_55 : f32 to vector<32x64xf32>
    %123 = arith.addf %122, %121 : vector<32x64xf32>
    %cst_56 = arith.constant 5.000000e-01 : f32
    %124 = vector.broadcast %cst_56 : f32 to vector<32x64xf32>
    %125 = arith.mulf %124, %123 : vector<32x64xf32>
    %126 = arith.mulf %113, %125 : vector<32x64xf32>
    %c0_57 = arith.constant 0 : index
    %c0_58 = arith.constant 0 : index
    %c0_59 = arith.constant 0 : index
    %127 = vector.load %arg12[%c0_57, %c0_58, %c0_59] : memref<2x64x32xf32, #tpu.memory_space<vmem>>, vector<1x64x32xf32>
    %128 = vector.shape_cast %127 : vector<1x64x32xf32> to vector<64x32xf32>
    %cst_60 = arith.constant dense<0.000000e+00> : vector<32x32xf32>
    %129 = tpu.matmul %126, %128, %cst_60 {dimension_numbers = #tpu.dot_dimension_numbers<[1], [0], [0], [1], [0, 0, 1, 1], [], []>} : vector<32x64xf32>, vector<64x32xf32>, vector<32x32xf32> -> vector<32x32xf32>
    %c0_61 = arith.constant 0 : index
    %c0_62 = arith.constant 0 : index
    %c0_63 = arith.constant 0 : index
    %130 = vector.load %arg13[%c0_61, %c0_62, %c0_63] : memref<2x1x32xf32, #tpu.memory_space<vmem>>, vector<1x1x32xf32>
    %131 = vector.shape_cast %130 : vector<1x1x32xf32> to vector<1x32xf32>
    %132 = vector.broadcast %131 : vector<1x32xf32> to vector<32x32xf32>
    %133 = arith.addf %129, %132 : vector<32x32xf32>
    %134 = arith.addf %133, %106 : vector<32x32xf32>
    %c0_64 = arith.constant 0 : index
    %c0_65 = arith.constant 0 : index
    %c0_66 = arith.constant 0 : index
    %135 = vector.load %arg14[%c0_64, %c0_65, %c0_66] : memref<2x1x32xf32, #tpu.memory_space<vmem>>, vector<1x1x32xf32>
    %136 = vector.shape_cast %135 : vector<1x1x32xf32> to vector<1x32xf32>
    %c0_67 = arith.constant 0 : index
    %c0_68 = arith.constant 0 : index
    %c0_69 = arith.constant 0 : index
    %137 = vector.load %arg15[%c0_67, %c0_68, %c0_69] : memref<2x1x32xf32, #tpu.memory_space<vmem>>, vector<1x1x32xf32>
    %138 = vector.shape_cast %137 : vector<1x1x32xf32> to vector<1x32xf32>
    %cst_70 = arith.constant dense<0.000000e+00> : vector<32xf32>
    %139 = vector.multi_reduction <add>, %134, %cst_70 [1] : vector<32x32xf32> to vector<32xf32>
    %140 = vector.shape_cast %139 : vector<32xf32> to vector<32x1xf32>
    %cst_71 = arith.constant 3.200000e+01 : f32
    %141 = vector.broadcast %cst_71 : f32 to vector<32x1xf32>
    %142 = arith.divf %140, %141 : vector<32x1xf32>
    %143 = vector.broadcast %142 : vector<32x1xf32> to vector<32x32xf32>
    %144 = arith.subf %134, %143 : vector<32x32xf32>
    %145 = arith.mulf %144, %144 : vector<32x32xf32>
    %cst_72 = arith.constant dense<0.000000e+00> : vector<32xf32>
    %146 = vector.multi_reduction <add>, %145, %cst_72 [1] : vector<32x32xf32> to vector<32xf32>
    %147 = vector.shape_cast %146 : vector<32xf32> to vector<32x1xf32>
    %cst_73 = arith.constant 3.200000e+01 : f32
    %148 = vector.broadcast %cst_73 : f32 to vector<32x1xf32>
    %149 = arith.divf %147, %148 : vector<32x1xf32>
    %cst_74 = arith.constant 9.99999974E-6 : f32
    %150 = vector.broadcast %cst_74 : f32 to vector<32x1xf32>
    %151 = arith.addf %149, %150 : vector<32x1xf32>
    %152 = math.rsqrt %151 : vector<32x1xf32>
    %153 = vector.broadcast %152 : vector<32x1xf32> to vector<32x32xf32>
    %154 = arith.mulf %144, %153 : vector<32x32xf32>
    %155 = vector.broadcast %136 : vector<1x32xf32> to vector<32x32xf32>
    %156 = arith.mulf %154, %155 : vector<32x32xf32>
    %157 = vector.broadcast %138 : vector<1x32xf32> to vector<32x32xf32>
    %158 = arith.addf %156, %157 : vector<32x32xf32>
    %c1 = arith.constant 1 : index
    %c0_75 = arith.constant 0 : index
    %c0_76 = arith.constant 0 : index
    %159 = vector.load %arg4[%c1, %c0_75, %c0_76] : memref<2x32x96xf32, #tpu.memory_space<vmem>>, vector<1x32x96xf32>
    %160 = vector.shape_cast %159 : vector<1x32x96xf32> to vector<32x96xf32>
    %cst_77 = arith.constant dense<0.000000e+00> : vector<32x96xf32>
    %161 = tpu.matmul %158, %160, %cst_77 {dimension_numbers = #tpu.dot_dimension_numbers<[1], [0], [0], [1], [0, 0, 1, 1], [], []>} : vector<32x32xf32>, vector<32x96xf32>, vector<32x96xf32> -> vector<32x96xf32>
    %c1_78 = arith.constant 1 : index
    %c0_79 = arith.constant 0 : index
    %c0_80 = arith.constant 0 : index
    %162 = vector.load %arg5[%c1_78, %c0_79, %c0_80] : memref<2x1x96xf32, #tpu.memory_space<vmem>>, vector<1x1x96xf32>
    %163 = vector.shape_cast %162 : vector<1x1x96xf32> to vector<1x96xf32>
    %164 = vector.broadcast %163 : vector<1x96xf32> to vector<32x96xf32>
    %165 = arith.addf %161, %164 : vector<32x96xf32>
    %c1_81 = arith.constant 1 : index
    %c0_82 = arith.constant 0 : index
    %c0_83 = arith.constant 0 : index
    %166 = vector.load %arg6[%c1_81, %c0_82, %c0_83] : memref<2x32x32xf32, #tpu.memory_space<vmem>>, vector<1x32x32xf32>
    %167 = vector.shape_cast %166 : vector<1x32x32xf32> to vector<32x32xf32>
    %168 = vector.extract_strided_slice %165 {offsets = [0, 0], sizes = [32, 16], strides = [1, 1]} : vector<32x96xf32> to vector<32x16xf32>
    %169 = vector.shape_cast %168 : vector<32x16xf32> to vector<4x8x16xf32>
    %170 = vector.extract_strided_slice %165 {offsets = [0, 32], sizes = [32, 16], strides = [1, 1]} : vector<32x96xf32> to vector<32x16xf32>
    %171 = vector.shape_cast %170 : vector<32x16xf32> to vector<4x8x16xf32>
    %172 = vector.extract_strided_slice %165 {offsets = [0, 64], sizes = [32, 16], strides = [1, 1]} : vector<32x96xf32> to vector<32x16xf32>
    %173 = vector.shape_cast %172 : vector<32x16xf32> to vector<4x8x16xf32>
    "tpu.trace_start"() <{level = 10 : i32, message = "bqd,bkd->bqk"}> : () -> ()
    %cst_84 = arith.constant dense<0.000000e+00> : vector<4x8x8xf32>
    %174 = tpu.matmul %169, %171, %cst_84 {dimension_numbers = #tpu.dot_dimension_numbers<[2], [2], [1], [1], [0, 0, 0, 1, 1, 1], [0], [0]>} : vector<4x8x16xf32>, vector<4x8x16xf32>, vector<4x8x8xf32> -> vector<4x8x8xf32>
    "tpu.trace_stop"() : () -> ()
    %175 = arith.addf %174, %23 : vector<4x8x8xf32>
    %cst_85 = arith.constant dense<0xFF800000> : vector<4x8xf32>
    %176 = vector.multi_reduction <maximumf>, %175, %cst_85 [2] : vector<4x8x8xf32> to vector<4x8xf32>
    %177 = vector.shape_cast %176 : vector<4x8xf32> to vector<4x8x1xf32>
    %178 = vector.broadcast %177 : vector<4x8x1xf32> to vector<4x8x8xf32>
    %179 = arith.subf %175, %178 : vector<4x8x8xf32>
    %180 = math.exp %179 : vector<4x8x8xf32>
    %cst_86 = arith.constant dense<0.000000e+00> : vector<4x8xf32>
    %181 = vector.multi_reduction <add>, %180, %cst_86 [2] : vector<4x8x8xf32> to vector<4x8xf32>
    %182 = vector.shape_cast %181 : vector<4x8xf32> to vector<4x8x1xf32>
    %183 = tpu.reciprocal %182 {approx = true} : vector<4x8x1xf32> -> vector<4x8x1xf32>
    %184 = vector.broadcast %183 : vector<4x8x1xf32> to vector<4x8x8xf32>
    %185 = arith.mulf %180, %184 : vector<4x8x8xf32>
    "tpu.trace_start"() <{level = 10 : i32, message = "bqk,bkd->bqd"}> : () -> ()
    %cst_87 = arith.constant dense<0.000000e+00> : vector<4x8x16xf32>
    %186 = tpu.matmul %185, %173, %cst_87 {dimension_numbers = #tpu.dot_dimension_numbers<[2], [1], [1], [2], [0, 0, 0, 1, 1, 2], [0], [0]>} : vector<4x8x8xf32>, vector<4x8x16xf32>, vector<4x8x16xf32> -> vector<4x8x16xf32>
    "tpu.trace_stop"() : () -> ()
    %187 = vector.shape_cast %186 : vector<4x8x16xf32> to vector<32x16xf32>
    %188 = vector.extract_strided_slice %167 {offsets = [0, 0], sizes = [16, 32], strides = [1, 1]} : vector<32x32xf32> to vector<16x32xf32>
    %cst_88 = arith.constant dense<0.000000e+00> : vector<32x32xf32>
    %189 = tpu.matmul %187, %188, %cst_88 {dimension_numbers = #tpu.dot_dimension_numbers<[1], [0], [0], [1], [0, 0, 1, 1], [], []>} : vector<32x16xf32>, vector<16x32xf32>, vector<32x32xf32> -> vector<32x32xf32>
    %190 = vector.extract_strided_slice %165 {offsets = [0, 16], sizes = [32, 16], strides = [1, 1]} : vector<32x96xf32> to vector<32x16xf32>
    %191 = vector.shape_cast %190 : vector<32x16xf32> to vector<4x8x16xf32>
    %192 = vector.extract_strided_slice %165 {offsets = [0, 48], sizes = [32, 16], strides = [1, 1]} : vector<32x96xf32> to vector<32x16xf32>
    %193 = vector.shape_cast %192 : vector<32x16xf32> to vector<4x8x16xf32>
    %194 = vector.extract_strided_slice %165 {offsets = [0, 80], sizes = [32, 16], strides = [1, 1]} : vector<32x96xf32> to vector<32x16xf32>
    %195 = vector.shape_cast %194 : vector<32x16xf32> to vector<4x8x16xf32>
    "tpu.trace_start"() <{level = 10 : i32, message = "bqd,bkd->bqk"}> : () -> ()
    %cst_89 = arith.constant dense<0.000000e+00> : vector<4x8x8xf32>
    %196 = tpu.matmul %191, %193, %cst_89 {dimension_numbers = #tpu.dot_dimension_numbers<[2], [2], [1], [1], [0, 0, 0, 1, 1, 1], [0], [0]>} : vector<4x8x16xf32>, vector<4x8x16xf32>, vector<4x8x8xf32> -> vector<4x8x8xf32>
    "tpu.trace_stop"() : () -> ()
    %197 = arith.addf %196, %23 : vector<4x8x8xf32>
    %cst_90 = arith.constant dense<0xFF800000> : vector<4x8xf32>
    %198 = vector.multi_reduction <maximumf>, %197, %cst_90 [2] : vector<4x8x8xf32> to vector<4x8xf32>
    %199 = vector.shape_cast %198 : vector<4x8xf32> to vector<4x8x1xf32>
    %200 = vector.broadcast %199 : vector<4x8x1xf32> to vector<4x8x8xf32>
    %201 = arith.subf %197, %200 : vector<4x8x8xf32>
    %202 = math.exp %201 : vector<4x8x8xf32>
    %cst_91 = arith.constant dense<0.000000e+00> : vector<4x8xf32>
    %203 = vector.multi_reduction <add>, %202, %cst_91 [2] : vector<4x8x8xf32> to vector<4x8xf32>
    %204 = vector.shape_cast %203 : vector<4x8xf32> to vector<4x8x1xf32>
    %205 = tpu.reciprocal %204 {approx = true} : vector<4x8x1xf32> -> vector<4x8x1xf32>
    %206 = vector.broadcast %205 : vector<4x8x1xf32> to vector<4x8x8xf32>
    %207 = arith.mulf %202, %206 : vector<4x8x8xf32>
    "tpu.trace_start"() <{level = 10 : i32, message = "bqk,bkd->bqd"}> : () -> ()
    %cst_92 = arith.constant dense<0.000000e+00> : vector<4x8x16xf32>
    %208 = tpu.matmul %207, %195, %cst_92 {dimension_numbers = #tpu.dot_dimension_numbers<[2], [1], [1], [2], [0, 0, 0, 1, 1, 2], [0], [0]>} : vector<4x8x8xf32>, vector<4x8x16xf32>, vector<4x8x16xf32> -> vector<4x8x16xf32>
    "tpu.trace_stop"() : () -> ()
    %209 = vector.shape_cast %208 : vector<4x8x16xf32> to vector<32x16xf32>
    %210 = vector.extract_strided_slice %167 {offsets = [16, 0], sizes = [16, 32], strides = [1, 1]} : vector<32x32xf32> to vector<16x32xf32>
    %cst_93 = arith.constant dense<0.000000e+00> : vector<32x32xf32>
    %211 = tpu.matmul %209, %210, %cst_93 {dimension_numbers = #tpu.dot_dimension_numbers<[1], [0], [0], [1], [0, 0, 1, 1], [], []>} : vector<32x16xf32>, vector<16x32xf32>, vector<32x32xf32> -> vector<32x32xf32>
    %212 = arith.addf %189, %211 : vector<32x32xf32>
    %c1_94 = arith.constant 1 : index
    %c0_95 = arith.constant 0 : index
    %c0_96 = arith.constant 0 : index
    %213 = vector.load %arg7[%c1_94, %c0_95, %c0_96] : memref<2x1x32xf32, #tpu.memory_space<vmem>>, vector<1x1x32xf32>
    %214 = vector.shape_cast %213 : vector<1x1x32xf32> to vector<1x32xf32>
    %215 = vector.broadcast %214 : vector<1x32xf32> to vector<32x32xf32>
    %216 = arith.addf %212, %215 : vector<32x32xf32>
    %217 = arith.addf %216, %158 : vector<32x32xf32>
    %c1_97 = arith.constant 1 : index
    %c0_98 = arith.constant 0 : index
    %c0_99 = arith.constant 0 : index
    %218 = vector.load %arg8[%c1_97, %c0_98, %c0_99] : memref<2x1x32xf32, #tpu.memory_space<vmem>>, vector<1x1x32xf32>
    %219 = vector.shape_cast %218 : vector<1x1x32xf32> to vector<1x32xf32>
    %c1_100 = arith.constant 1 : index
    %c0_101 = arith.constant 0 : index
    %c0_102 = arith.constant 0 : index
    %220 = vector.load %arg9[%c1_100, %c0_101, %c0_102] : memref<2x1x32xf32, #tpu.memory_space<vmem>>, vector<1x1x32xf32>
    %221 = vector.shape_cast %220 : vector<1x1x32xf32> to vector<1x32xf32>
    %cst_103 = arith.constant dense<0.000000e+00> : vector<32xf32>
    %222 = vector.multi_reduction <add>, %217, %cst_103 [1] : vector<32x32xf32> to vector<32xf32>
    %223 = vector.shape_cast %222 : vector<32xf32> to vector<32x1xf32>
    %cst_104 = arith.constant 3.200000e+01 : f32
    %224 = vector.broadcast %cst_104 : f32 to vector<32x1xf32>
    %225 = arith.divf %223, %224 : vector<32x1xf32>
    %226 = vector.broadcast %225 : vector<32x1xf32> to vector<32x32xf32>
    %227 = arith.subf %217, %226 : vector<32x32xf32>
    %228 = arith.mulf %227, %227 : vector<32x32xf32>
    %cst_105 = arith.constant dense<0.000000e+00> : vector<32xf32>
    %229 = vector.multi_reduction <add>, %228, %cst_105 [1] : vector<32x32xf32> to vector<32xf32>
    %230 = vector.shape_cast %229 : vector<32xf32> to vector<32x1xf32>
    %cst_106 = arith.constant 3.200000e+01 : f32
    %231 = vector.broadcast %cst_106 : f32 to vector<32x1xf32>
    %232 = arith.divf %230, %231 : vector<32x1xf32>
    %cst_107 = arith.constant 9.99999974E-6 : f32
    %233 = vector.broadcast %cst_107 : f32 to vector<32x1xf32>
    %234 = arith.addf %232, %233 : vector<32x1xf32>
    %235 = math.rsqrt %234 : vector<32x1xf32>
    %236 = vector.broadcast %235 : vector<32x1xf32> to vector<32x32xf32>
    %237 = arith.mulf %227, %236 : vector<32x32xf32>
    %238 = vector.broadcast %219 : vector<1x32xf32> to vector<32x32xf32>
    %239 = arith.mulf %237, %238 : vector<32x32xf32>
    %240 = vector.broadcast %221 : vector<1x32xf32> to vector<32x32xf32>
    %241 = arith.addf %239, %240 : vector<32x32xf32>
    %c1_108 = arith.constant 1 : index
    %c0_109 = arith.constant 0 : index
    %c0_110 = arith.constant 0 : index
    %242 = vector.load %arg10[%c1_108, %c0_109, %c0_110] : memref<2x32x64xf32, #tpu.memory_space<vmem>>, vector<1x32x64xf32>
    %243 = vector.shape_cast %242 : vector<1x32x64xf32> to vector<32x64xf32>
    %cst_111 = arith.constant dense<0.000000e+00> : vector<32x64xf32>
    %244 = tpu.matmul %241, %243, %cst_111 {dimension_numbers = #tpu.dot_dimension_numbers<[1], [0], [0], [1], [0, 0, 1, 1], [], []>} : vector<32x32xf32>, vector<32x64xf32>, vector<32x64xf32> -> vector<32x64xf32>
    %c1_112 = arith.constant 1 : index
    %c0_113 = arith.constant 0 : index
    %c0_114 = arith.constant 0 : index
    %245 = vector.load %arg11[%c1_112, %c0_113, %c0_114] : memref<2x1x64xf32, #tpu.memory_space<vmem>>, vector<1x1x64xf32>
    %246 = vector.shape_cast %245 : vector<1x1x64xf32> to vector<1x64xf32>
    %247 = vector.broadcast %246 : vector<1x64xf32> to vector<32x64xf32>
    %248 = arith.addf %244, %247 : vector<32x64xf32>
    %249 = arith.mulf %248, %248 : vector<32x64xf32>
    %250 = arith.mulf %248, %249 : vector<32x64xf32>
    %cst_115 = arith.constant 4.471500e-02 : f32
    %251 = vector.broadcast %cst_115 : f32 to vector<32x64xf32>
    %252 = arith.mulf %251, %250 : vector<32x64xf32>
    %253 = arith.addf %248, %252 : vector<32x64xf32>
    %cst_116 = arith.constant 0.797884583 : f32
    %254 = vector.broadcast %cst_116 : f32 to vector<32x64xf32>
    %255 = arith.mulf %254, %253 : vector<32x64xf32>
    %256 = math.tanh %255 : vector<32x64xf32>
    %cst_117 = arith.constant 1.000000e+00 : f32
    %257 = vector.broadcast %cst_117 : f32 to vector<32x64xf32>
    %258 = arith.addf %257, %256 : vector<32x64xf32>
    %cst_118 = arith.constant 5.000000e-01 : f32
    %259 = vector.broadcast %cst_118 : f32 to vector<32x64xf32>
    %260 = arith.mulf %259, %258 : vector<32x64xf32>
    %261 = arith.mulf %248, %260 : vector<32x64xf32>
    %c1_119 = arith.constant 1 : index
    %c0_120 = arith.constant 0 : index
    %c0_121 = arith.constant 0 : index
    %262 = vector.load %arg12[%c1_119, %c0_120, %c0_121] : memref<2x64x32xf32, #tpu.memory_space<vmem>>, vector<1x64x32xf32>
    %263 = vector.shape_cast %262 : vector<1x64x32xf32> to vector<64x32xf32>
    %cst_122 = arith.constant dense<0.000000e+00> : vector<32x32xf32>
    %264 = tpu.matmul %261, %263, %cst_122 {dimension_numbers = #tpu.dot_dimension_numbers<[1], [0], [0], [1], [0, 0, 1, 1], [], []>} : vector<32x64xf32>, vector<64x32xf32>, vector<32x32xf32> -> vector<32x32xf32>
    %c1_123 = arith.constant 1 : index
    %c0_124 = arith.constant 0 : index
    %c0_125 = arith.constant 0 : index
    %265 = vector.load %arg13[%c1_123, %c0_124, %c0_125] : memref<2x1x32xf32, #tpu.memory_space<vmem>>, vector<1x1x32xf32>
    %266 = vector.shape_cast %265 : vector<1x1x32xf32> to vector<1x32xf32>
    %267 = vector.broadcast %266 : vector<1x32xf32> to vector<32x32xf32>
    %268 = arith.addf %264, %267 : vector<32x32xf32>
    %269 = arith.addf %268, %241 : vector<32x32xf32>
    %c1_126 = arith.constant 1 : index
    %c0_127 = arith.constant 0 : index
    %c0_128 = arith.constant 0 : index
    %270 = vector.load %arg14[%c1_126, %c0_127, %c0_128] : memref<2x1x32xf32, #tpu.memory_space<vmem>>, vector<1x1x32xf32>
    %271 = vector.shape_cast %270 : vector<1x1x32xf32> to vector<1x32xf32>
    %c1_129 = arith.constant 1 : index
    %c0_130 = arith.constant 0 : index
    %c0_131 = arith.constant 0 : index
    %272 = vector.load %arg15[%c1_129, %c0_130, %c0_131] : memref<2x1x32xf32, #tpu.memory_space<vmem>>, vector<1x1x32xf32>
    %273 = vector.shape_cast %272 : vector<1x1x32xf32> to vector<1x32xf32>
    %cst_132 = arith.constant dense<0.000000e+00> : vector<32xf32>
    %274 = vector.multi_reduction <add>, %269, %cst_132 [1] : vector<32x32xf32> to vector<32xf32>
    %275 = vector.shape_cast %274 : vector<32xf32> to vector<32x1xf32>
    %cst_133 = arith.constant 3.200000e+01 : f32
    %276 = vector.broadcast %cst_133 : f32 to vector<32x1xf32>
    %277 = arith.divf %275, %276 : vector<32x1xf32>
    %278 = vector.broadcast %277 : vector<32x1xf32> to vector<32x32xf32>
    %279 = arith.subf %269, %278 : vector<32x32xf32>
    %280 = arith.mulf %279, %279 : vector<32x32xf32>
    %cst_134 = arith.constant dense<0.000000e+00> : vector<32xf32>
    %281 = vector.multi_reduction <add>, %280, %cst_134 [1] : vector<32x32xf32> to vector<32xf32>
    %282 = vector.shape_cast %281 : vector<32xf32> to vector<32x1xf32>
    %cst_135 = arith.constant 3.200000e+01 : f32
    %283 = vector.broadcast %cst_135 : f32 to vector<32x1xf32>
    %284 = arith.divf %282, %283 : vector<32x1xf32>
    %cst_136 = arith.constant 9.99999974E-6 : f32
    %285 = vector.broadcast %cst_136 : f32 to vector<32x1xf32>
    %286 = arith.addf %284, %285 : vector<32x1xf32>
    %287 = math.rsqrt %286 : vector<32x1xf32>
    %288 = vector.broadcast %287 : vector<32x1xf32> to vector<32x32xf32>
    %289 = arith.mulf %279, %288 : vector<32x32xf32>
    %290 = vector.broadcast %271 : vector<1x32xf32> to vector<32x32xf32>
    %291 = arith.mulf %289, %290 : vector<32x32xf32>
    %292 = vector.broadcast %273 : vector<1x32xf32> to vector<32x32xf32>
    %293 = arith.addf %291, %292 : vector<32x32xf32>
    %294 = vector.shape_cast %293 : vector<32x32xf32> to vector<4x8x32xf32>
    %295 = vector.extract_strided_slice %294 {offsets = [0, 0, 0], sizes = [4, 1, 32], strides = [1, 1, 1]} : vector<4x8x32xf32> to vector<4x1x32xf32>
    %296 = vector.shape_cast %295 : vector<4x1x32xf32> to vector<4x32xf32>
    %c0_137 = arith.constant 0 : index
    %c0_138 = arith.constant 0 : index
    %297 = vector.load %arg16[%c0_137, %c0_138] : memref<32x32xf32, #tpu.memory_space<vmem>>, vector<32x32xf32>
    %cst_139 = arith.constant dense<0.000000e+00> : vector<4x32xf32>
    %298 = tpu.matmul %296, %297, %cst_139 {dimension_numbers = #tpu.dot_dimension_numbers<[1], [0], [0], [1], [0, 0, 1, 1], [], []>} : vector<4x32xf32>, vector<32x32xf32>, vector<4x32xf32> -> vector<4x32xf32>
    %c0_140 = arith.constant 0 : index
    %c0_141 = arith.constant 0 : index
    %299 = vector.load %arg17[%c0_140, %c0_141] : memref<1x32xf32, #tpu.memory_space<vmem>>, vector<1x32xf32>
    %300 = vector.broadcast %299 : vector<1x32xf32> to vector<4x32xf32>
    %301 = arith.addf %298, %300 : vector<4x32xf32>
    %302 = math.tanh %301 : vector<4x32xf32>
    %c0_142 = arith.constant 0 : index
    %c0_143 = arith.constant 0 : index
    %303 = vector.load %arg18[%c0_142, %c0_143] : memref<32x1xf32, #tpu.memory_space<vmem>>, vector<32x1xf32>
    %cst_144 = arith.constant dense<0.000000e+00> : vector<4x1xf32>
    %304 = tpu.matmul %302, %303, %cst_144 {dimension_numbers = #tpu.dot_dimension_numbers<[1], [0], [0], [1], [0, 0, 1, 1], [], []>} : vector<4x32xf32>, vector<32x1xf32>, vector<4x1xf32> -> vector<4x1xf32>
    %c0_145 = arith.constant 0 : index
    %c0_146 = arith.constant 0 : index
    %305 = vector.load %arg19[%c0_145, %c0_146] : memref<1x1xf32, #tpu.memory_space<vmem>>, vector<1x1xf32>
    %306 = vector.broadcast %305 : vector<1x1xf32> to vector<4x1xf32>
    %307 = arith.addf %304, %306 : vector<4x1xf32>
    %c0_147 = arith.constant 0 : index
    %c0_148 = arith.constant 0 : index
    %308 = vector.load %arg20[%c0_147, %c0_148] : memref<4x1xf32, #tpu.memory_space<vmem>>, vector<4x1xf32>
    tpu.vector_store %arg20[%c0_147, %c0_148], %307 {strides = array<i32>} : memref<4x1xf32, #tpu.memory_space<vmem>>, vector<4x1xf32>,
    return
  }
}

</mosaic_0001>

<llo_original>
// kernel: roberta_multiple_choice.1
$region0: #{roberta_multiple_choice.1}
  #allocation0 [shape = 'u32[]', space=smem, size = 0x4, offset = 0x4, fixed_abs, tag = 'smem constant byte address 0x4 - core index']
  #allocation1 [shape = 'u32[72,128]{1,0:T(1,128)}', space=vmem, size = 0x9000, scoped, tag = 'internal scratch']
  #allocation2 [shape = 'f32[1,1]{1,0:T(1,128)S(1)}', space=vmem, size = 0x200, scoped, tag = 'scoped memory for roberta_multiple_choice.1']
  %s0 = inlined_call_operand.vmem [shape: f32[32,32], index: 0, kind: input, shape index: {}]
  %s1 = inlined_call_operand.vmem [shape: f32[4,8,8], index: 1, kind: input, shape index: {}]
  %s2 = inlined_call_operand.vmem [shape: f32[1,32], index: 2, kind: input, shape index: {}]
  %s3 = inlined_call_operand.vmem [shape: f32[1,32], index: 3, kind: input, shape index: {}]
  %s4 = inlined_call_operand.vmem [shape: f32[2,32,96], index: 4, kind: input, shape index: {}]
  %s5 = inlined_call_operand.vmem [shape: f32[2,1,96], index: 5, kind: input, shape index: {}]
  %s6 = inlined_call_operand.vmem [shape: f32[2,32,32], index: 6, kind: input, shape index: {}]
  %s7 = inlined_call_operand.vmem [shape: f32[2,1,32], index: 7, kind: input, shape index: {}]
  %s8 = inlined_call_operand.vmem [shape: f32[2,1,32], index: 8, kind: input, shape index: {}]
  %s9 = inlined_call_operand.vmem [shape: f32[2,1,32], index: 9, kind: input, shape index: {}]
  %s10 = inlined_call_operand.vmem [shape: f32[2,32,64], index: 10, kind: input, shape index: {}]
  %s11 = inlined_call_operand.vmem [shape: f32[2,1,64], index: 11, kind: input, shape index: {}]
  %s12 = inlined_call_operand.vmem [shape: f32[2,64,32], index: 12, kind: input, shape index: {}]
  %s13 = inlined_call_operand.vmem [shape: f32[2,1,32], index: 13, kind: input, shape index: {}]
  %s14 = inlined_call_operand.vmem [shape: f32[2,1,32], index: 14, kind: input, shape index: {}]
  %s15 = inlined_call_operand.vmem [shape: f32[2,1,32], index: 15, kind: input, shape index: {}]
  %s16 = inlined_call_operand.vmem [shape: f32[32,32], index: 16, kind: input, shape index: {}]
  %s17 = inlined_call_operand.vmem [shape: f32[1,32], index: 17, kind: input, shape index: {}]
  %s18 = inlined_call_operand.vmem [shape: f32[32,1], index: 18, kind: input, shape index: {}]
  %s19 = inlined_call_operand.<no memory space> [shape: f32[1,1], index: 19, kind: input, shape index: {}]
  %s20 = inlined_call_operand.vmem [shape: f32[4,1], index: 20, kind: output, shape index: {}]
  %s21 = sld [smem:[#allocation0]]
  $region90: #{roberta_multiple_choice.1} parent=0
    _
  %s23 = ssub.s32 1, %s21
  %s24 = scalar_select 0, %s23, %s21
  %v25 = vstv %s19
  %26 = vst [vmem:[#allocation2] sm:$0x1] %v25
  // Predicated region
  $region2: #{roberta_multiple_choice.1} parent=0 // pred_check
    _
  $region3: #{roberta_multiple_choice.1} parent=0 // pred_check_branch
    %28 = sbr.rel (0) target = $region5
  $region4: #{roberta_multiple_choice.1} parent=0 // pred_region
    _
  $region5: #{roberta_multiple_choice.1} parent=0 // pred_fallthru
    _
  // Predicated region
  $region6: #{roberta_multiple_choice.1} parent=0 // pred_check
    _
  $region7: #{roberta_multiple_choice.1} parent=0 // pred_check_branch
    %30 = sbr.rel (0) target = $region9
  $region8: #{roberta_multiple_choice.1} parent=0 // pred_region
    _
  $region9: #{roberta_multiple_choice.1} parent=0 // pred_fallthru
    _
  // Predicated region
  $region10: #{roberta_multiple_choice.1} parent=0 // pred_check
    _
  $region11: #{roberta_multiple_choice.1} parent=0 // pred_check_branch
    %32 = sbr.rel (0) target = $region13
  $region12: #{roberta_multiple_choice.1} parent=0 // pred_region
    _
  $region13: #{roberta_multiple_choice.1} parent=0 // pred_fallthru
    _
  // Predicated region
  $region14: #{roberta_multiple_choice.1} parent=0 // pred_check
    _
  $region15: #{roberta_multiple_choice.1} parent=0 // pred_check_branch
    %34 = sbr.rel (0) target = $region17
  $region16: #{roberta_multiple_choice.1} parent=0 // pred_region
    _
  $region17: #{roberta_multiple_choice.1} parent=0 // pred_fallthru
    _
  // Predicated region
  $region18: #{roberta_multiple_choice.1} parent=0 // pred_check
    _
  $region19: #{roberta_multiple_choice.1} parent=0 // pred_check_branch
    %36 = sbr.rel (0) target = $region21
  $region20: #{roberta_multiple_choice.1} parent=0 // pred_region
    _
  $region21: #{roberta_multiple_choice.1} parent=0 // pred_fallthru
    _
  // Predicated region
  $region22: #{roberta_multiple_choice.1} parent=0 // pred_check
    _
  $region23: #{roberta_multiple_choice.1} parent=0 // pred_check_branch
    %38 = sbr.rel (0) target = $region25
  $region24: #{roberta_multiple_choice.1} parent=0 // pred_region
    _
  $region25: #{roberta_multiple_choice.1} parent=0 // pred_fallthru
    _
  // Predicated region
  $region26: #{roberta_multiple_choice.1} parent=0 // pred_check
    _
  $region27: #{roberta_multiple_choice.1} parent=0 // pred_check_branch
    %40 = sbr.rel (0) target = $region29
  $region28: #{roberta_multiple_choice.1} parent=0 // pred_region
    _
  $region29: #{roberta_multiple_choice.1} parent=0 // pred_fallthru
    _
  // Predicated region
  $region30: #{roberta_multiple_choice.1} parent=0 // pred_check
    _
  $region31: #{roberta_multiple_choice.1} parent=0 // pred_check_branch
    %42 = sbr.rel (0) target = $region33
  $region32: #{roberta_multiple_choice.1} parent=0 // pred_region
    _
  $region33: #{roberta_multiple_choice.1} parent=0 // pred_fallthru
    _
  // Predicated region
  $region34: #{roberta_multiple_choice.1} parent=0 // pred_check
    _
  $region35: #{roberta_multiple_choice.1} parent=0 // pred_check_branch
    %44 = sbr.rel (0) target = $region37
  $region36: #{roberta_multiple_choice.1} parent=0 // pred_region
    _
  $region37: #{roberta_multiple_choice.1} parent=0 // pred_fallthru
    _
  // Predicated region
  $region38: #{roberta_multiple_choice.1} parent=0 // pred_check
    _
  $region39: #{roberta_multiple_choice.1} parent=0 // pred_check_branch
    %46 = sbr.rel (0) target = $region41
  $region40: #{roberta_multiple_choice.1} parent=0 // pred_region
    _
  $region41: #{roberta_multiple_choice.1} parent=0 // pred_fallthru
    _
  // Predicated region
  $region42: #{roberta_multiple_choice.1} parent=0 // pred_check
    _
  $region43: #{roberta_multiple_choice.1} parent=0 // pred_check_branch
    %48 = sbr.rel (0) target = $region45
  $region44: #{roberta_multiple_choice.1} parent=0 // pred_region
    _
  $region45: #{roberta_multiple_choice.1} parent=0 // pred_fallthru
    _
  // Predicated region
  $region46: #{roberta_multiple_choice.1} parent=0 // pred_check
    _
  $region47: #{roberta_multiple_choice.1} parent=0 // pred_check_branch
    %50 = sbr.rel (0) target = $region49
  $region48: #{roberta_multiple_choice.1} parent=0 // pred_region
    _
  $region49: #{roberta_multiple_choice.1} parent=0 // pred_fallthru
    _
  // Predicated region
  $region50: #{roberta_multiple_choice.1} parent=0 // pred_check
    _
  $region51: #{roberta_multiple_choice.1} parent=0 // pred_check_branch
    %52 = sbr.rel (0) target = $region53
  $region52: #{roberta_multiple_choice.1} parent=0 // pred_region
    _
  $region53: #{roberta_multiple_choice.1} parent=0 // pred_fallthru
    _
  // Predicated region
  $region54: #{roberta_multiple_choice.1} parent=0 // pred_check
    _
  $region55: #{roberta_multiple_choice.1} parent=0 // pred_check_branch
    %54 = sbr.rel (0) target = $region57
  $region56: #{roberta_multiple_choice.1} parent=0 // pred_region
    _
  $region57: #{roberta_multiple_choice.1} parent=0 // pred_fallthru
    _
  // Predicated region
  $region58: #{roberta_multiple_choice.1} parent=0 // pred_check
    _
  $region59: #{roberta_multiple_choice.1} parent=0 // pred_check_branch
    %56 = sbr.rel (0) target = $region61
  $region60: #{roberta_multiple_choice.1} parent=0 // pred_region
    _
  $region61: #{roberta_multiple_choice.1} parent=0 // pred_fallthru
    _
  // Predicated region
  $region62: #{roberta_multiple_choice.1} parent=0 // pred_check
    _
  $region63: #{roberta_multiple_choice.1} parent=0 // pred_check_branch
    %58 = sbr.rel (0) target = $region65
  $region64: #{roberta_multiple_choice.1} parent=0 // pred_region
    _
  $region65: #{roberta_multiple_choice.1} parent=0 // pred_fallthru
    _
  // Predicated region
  $region66: #{roberta_multiple_choice.1} parent=0 // pred_check
    _
  $region67: #{roberta_multiple_choice.1} parent=0 // pred_check_branch
    %60 = sbr.rel (0) target = $region69
  $region68: #{roberta_multiple_choice.1} parent=0 // pred_region
    _
  $region69: #{roberta_multiple_choice.1} parent=0 // pred_fallthru
    _
  // Predicated region
  $region70: #{roberta_multiple_choice.1} parent=0 // pred_check
    _
  $region71: #{roberta_multiple_choice.1} parent=0 // pred_check_branch
    %62 = sbr.rel (0) target = $region73
  $region72: #{roberta_multiple_choice.1} parent=0 // pred_region
    _
  $region73: #{roberta_multiple_choice.1} parent=0 // pred_fallthru
    _
  // Predicated region
  $region74: #{roberta_multiple_choice.1} parent=0 // pred_check
    _
  $region75: #{roberta_multiple_choice.1} parent=0 // pred_check_branch
    %64 = sbr.rel (0) target = $region77
  $region76: #{roberta_multiple_choice.1} parent=0 // pred_region
    _
  $region77: #{roberta_multiple_choice.1} parent=0 // pred_fallthru
    _
  // Predicated region
  $region78: #{roberta_multiple_choice.1} parent=0 // pred_check
    _
  $region79: #{roberta_multiple_choice.1} parent=0 // pred_check_branch
    %66 = sbr.rel (0) target = $region81
  $region80: #{roberta_multiple_choice.1} parent=0 // pred_region
    _
  $region81: #{roberta_multiple_choice.1} parent=0 // pred_fallthru
    _
  %v67 = vld [vmem:[%s0] sm:$0xff]
  %v68 = vld [vmem:[%s0 + $0x8] sm:$0xff]
  %v69 = vld [vmem:[%s0 + $0x10] sm:$0xff]
  %v70 = vld [vmem:[%s0 + $0x18] sm:$0xff]
  %v71 = vld [vmem:[%s2] sm:$0x1]
  %v72 = vld [vmem:[%s3] sm:$0x1]
  %vm73 = vcmask 261120
  %v74 = vsel %vm73, %v67, 0.0
  %75 = vadd.xlane.f32.xlu0 %v74
  %v76 = vpop.xlane.xlu0 %75
  %v77 = vsel %vm73, %v68, 0.0
  %78 = vadd.xlane.f32.xlu0 %v77
  %v79 = vpop.xlane.xlu0 %78
  %v80 = vsel %vm73, %v69, 0.0
  %81 = vadd.xlane.f32.xlu0 %v80
  %v82 = vpop.xlane.xlu0 %81
  %v83 = vsel %vm73, %v70, 0.0
  %84 = vadd.xlane.f32.xlu0 %v83
  %v85 = vpop.xlane.xlu0 %84
  %v86 = vrcp.pop 32.0
  %v87 = vmul.f32 32.0, %v86
  %v88 = vsub.f32 1.0, %v87
  %v89 = vmul.f32 %v86, %v88
  %v90 = vadd.f32 %v86, %v89
  %vm91 = vweird.f32 %v86
  %v92 = vsel %vm91, %v86, %v90
  %v93 = vmul.f32 %v76, %v92
  %v94 = vmul.f32 %v79, %v92
  %v95 = vmul.f32 %v82, %v92
  %v96 = vmul.f32 %v85, %v92
  %v97 = vsub.f32 %v67, %v93
  %v98 = vsub.f32 %v68, %v94
  %v99 = vsub.f32 %v69, %v95
  %v100 = vsub.f32 %v70, %v96
  %v101 = vmul.f32 %v97, %v97
  %v102 = vmul.f32 %v98, %v98
  %v103 = vmul.f32 %v99, %v99
  %v104 = vmul.f32 %v100, %v100
  %v105 = vsel %vm73, %v101, 0.0
  %106 = vadd.xlane.f32.xlu0 %v105
  %v107 = vpop.xlane.xlu0 %106
  %v108 = vsel %vm73, %v102, 0.0
  %109 = vadd.xlane.f32.xlu0 %v108
  %v110 = vpop.xlane.xlu0 %109
  %v111 = vsel %vm73, %v103, 0.0
  %112 = vadd.xlane.f32.xlu0 %v111
  %v113 = vpop.xlane.xlu0 %112
  %v114 = vsel %vm73, %v104, 0.0
  %115 = vadd.xlane.f32.xlu0 %v114
  %v116 = vpop.xlane.xlu0 %115
  %v117 = vmul.f32 %v107, %v92
  %v118 = vmul.f32 %v110, %v92
  %v119 = vmul.f32 %v113, %v92
  %v120 = vmul.f32 %v116, %v92
  %v121 = vadd.f32 %v117, 1e-05
  %v122 = vadd.f32 %v118, 1e-05
  %v123 = vadd.f32 %v119, 1e-05
  %v124 = vadd.f32 %v120, 1e-05
  %v125 = vrsqrt.pop %v121
  %v126 = vmul.f32 %v125, %v121
  %v127 = vmul.f32 %v126, %v125
  %v128 = vmul.f32 0.5, %v127
  %v129 = vsub.f32 1.5, %v128
  %v130 = vmul.f32 %v125, %v129
  %vm131 = vweird.f32 %v121
  %vm132 = vweird.f32 %v125
  %vm133 = vmor %vm131, %vm132
  %v134 = vsel %vm133, %v125, %v130
  %v135 = vrsqrt.pop %v122
  %v136 = vmul.f32 %v135, %v122
  %v137 = vmul.f32 %v136, %v135
  %v138 = vmul.f32 0.5, %v137
  %v139 = vsub.f32 1.5, %v138
  %v140 = vmul.f32 %v135, %v139
  %vm141 = vweird.f32 %v122
  %vm142 = vweird.f32 %v135
  %vm143 = vmor %vm141, %vm142
  %v144 = vsel %vm143, %v135, %v140
  %v145 = vrsqrt.pop %v123
  %v146 = vmul.f32 %v145, %v123
  %v147 = vmul.f32 %v146, %v145
  %v148 = vmul.f32 0.5, %v147
  %v149 = vsub.f32 1.5, %v148
  %v150 = vmul.f32 %v145, %v149
  %vm151 = vweird.f32 %v123
  %vm152 = vweird.f32 %v145
  %vm153 = vmor %vm151, %vm152
  %v154 = vsel %vm153, %v145, %v150
  %v155 = vrsqrt.pop %v124
  %v156 = vmul.f32 %v155, %v124
  %v157 = vmul.f32 %v156, %v155
  %v158 = vmul.f32 0.5, %v157
  %v159 = vsub.f32 1.5, %v158
  %v160 = vmul.f32 %v155, %v159
  %vm161 = vweird.f32 %v124
  %vm162 = vweird.f32 %v155
  %vm163 = vmor %vm161, %vm162
  %v164 = vsel %vm163, %v155, %v160
  %v165 = vmul.f32 %v97, %v134
  %v166 = vmul.f32 %v98, %v144
  %v167 = vmul.f32 %v99, %v154
  %v168 = vmul.f32 %v100, %v164
  %v170 = vperm.slane %v71, 0
  %v172 = vmul.f32 %v165, %v170
  %v173 = vmul.f32 %v166, %v170
  %v174 = vmul.f32 %v167, %v170
  %v175 = vmul.f32 %v168, %v170
  %v177 = vperm.slane %v72, 0
  %v179 = vadd.f32 %v172, %v177
  %v180 = vadd.f32 %v173, %v177
  %v181 = vadd.f32 %v174, %v177
  %v182 = vadd.f32 %v175, %v177
  %v183 = vld [vmem:[%s1] sm:$0xff]
  %v184 = vld [vmem:[%s1 + $0x8] sm:$0xff]
  %v185 = vld [vmem:[%s1 + $0x10] sm:$0xff]
  %v186 = vld [vmem:[%s1 + $0x18] sm:$0xff]
  %v187 = vld [vmem:[%s4] sm:$0xff]
  %v188 = vld [vmem:[%s4 + $0x8] sm:$0xff]
  %v189 = vld [vmem:[%s4 + $0x10] sm:$0xff]
  %v190 = vld [vmem:[%s4 + $0x18] sm:$0xff]
  %v191 = vld [vmem:[%s5] sm:$0x1]
  %v193 = vperm.slane %v191, 0
  %v196 = vsel %vm73, %v179, 0
  %v199 = vsel %vm73, %v180, 0
  %v202 = vsel %vm73, %v181, 0
  %v205 = vsel %vm73, %v182, 0
  %207 = vmatpush.msra.mxu0 0.0
  %208 = vmatpush.msra.mxu0 0.0
  %209 = vmatpush.msra.mxu0 0.0
  %210 = vmatpush.msra.mxu0 0.0
  %211 = vmatpush.msra.mxu0 0.0
  %212 = vmatpush.msra.mxu0 0.0
  %213 = vmatpush.msra.mxu0 0.0
  %214 = vmatpush.msra.mxu0 0.0
  %215 = vmatpush.msra.mxu0 0.0
  %216 = vmatpush.msra.mxu0 0.0
  %217 = vmatpush.msra.mxu0 0.0
  %218 = vmatpush.msra.mxu0 0.0
  %219 = vmatpush.msra.mxu0 %v190
  %220 = vmatpush.msra.mxu0 %v189
  %221 = vmatpush.msra.mxu0 %v188
  %222 = vmatpush.msra.mxu0 %v187
  %223 = vmatmul.f32.gmra.mxu0 %v196
  %v224 = vpop.f32.mrf.mxu0
  %v225 = vadd.f32 %v193, %v224
  %226 = vmatmul.f32.gmra.mxu0 %v199
  %v227 = vpop.f32.mrf.mxu0
  %v228 = vadd.f32 %v193, %v227
  %229 = vmatmul.f32.gmra.mxu0 %v202
  %v230 = vpop.f32.mrf.mxu0
  %v231 = vadd.f32 %v193, %v230
  %232 = vmatmul.f32.gmra.mxu0 %v205
  %v233 = vpop.f32.mrf.mxu0
  %v234 = vadd.f32 %v193, %v233
  %235 = vdwg.mxu0
  %v236 = vld [vmem:[%s6] sm:$0xff]
  %v237 = vld [vmem:[%s6 + $0x8] sm:$0xff]
  %v238 = vld [vmem:[%s6 + $0x10] sm:$0xff]
  %v239 = vld [vmem:[%s6 + $0x18] sm:$0xff]
  %241 = vrot.lane.b32.xlu0 %v225, 96
  %v242 = vpop.permute.xlu0 %241
  %vm243 = vcmask 130048
  %v244 = vsel %vm243, %v225, 0
  %v246 = vsel %vm243, %v242, 0
  %248 = vmatpush.xpose.msra.mxu0 0.0
  %249 = vmatpush.xpose.msra.mxu0 0.0
  %250 = vmatpush.xpose.msra.mxu0 0.0
  %251 = vmatpush.xpose.msra.mxu0 0.0
  %252 = vmatpush.xpose.msra.mxu0 0.0
  %253 = vmatpush.xpose.msra.mxu0 0.0
  %254 = vmatpush.xpose.msra.mxu0 0.0
  %255 = vmatpush.xpose.msra.mxu0 0.0
  %256 = vmatpush.xpose.msra.mxu0 0.0
  %257 = vmatpush.xpose.msra.mxu0 0.0
  %258 = vmatpush.xpose.msra.mxu0 0.0
  %259 = vmatpush.xpose.msra.mxu0 0.0
  %260 = vmatpush.xpose.msra.mxu0 0.0
  %261 = vmatpush.xpose.msra.mxu0 0.0
  %262 = vmatpush.xpose.msra.mxu0 0.0
  %263 = vmatpush.xpose.msra.mxu0 %v246
  %264 = vmatmul.f32.gmra.mxu0 %v244
  %v265 = vpop.f32.mrf.mxu0
  %v266 = vadd.f32 %v183, %v265
  %267 = vdwg.mxu0
  %269 = vrot.lane.b32.xlu0 %v228, 96
  %v270 = vpop.permute.xlu0 %269
  %v271 = vsel %vm243, %v228, 0
  %v273 = vsel %vm243, %v270, 0
  %275 = vmatpush.xpose.msra.mxu0 0.0
  %276 = vmatpush.xpose.msra.mxu0 0.0
  %277 = vmatpush.xpose.msra.mxu0 0.0
  %278 = vmatpush.xpose.msra.mxu0 0.0
  %279 = vmatpush.xpose.msra.mxu0 0.0
  %280 = vmatpush.xpose.msra.mxu0 0.0
  %281 = vmatpush.xpose.msra.mxu0 0.0
  %282 = vmatpush.xpose.msra.mxu0 0.0
  %283 = vmatpush.xpose.msra.mxu0 0.0
  %284 = vmatpush.xpose.msra.mxu0 0.0
  %285 = vmatpush.xpose.msra.mxu0 0.0
  %286 = vmatpush.xpose.msra.mxu0 0.0
  %287 = vmatpush.xpose.msra.mxu0 0.0
  %288 = vmatpush.xpose.msra.mxu0 0.0
  %289 = vmatpush.xpose.msra.mxu0 0.0
  %290 = vmatpush.xpose.msra.mxu0 %v273
  %291 = vmatmul.f32.gmra.mxu0 %v271
  %v292 = vpop.f32.mrf.mxu0
  %v293 = vadd.f32 %v184, %v292
  %294 = vdwg.mxu0
  %296 = vrot.lane.b32.xlu0 %v231, 96
  %v297 = vpop.permute.xlu0 %296
  %v298 = vsel %vm243, %v231, 0
  %v300 = vsel %vm243, %v297, 0
  %302 = vmatpush.xpose.msra.mxu0 0.0
  %303 = vmatpush.xpose.msra.mxu0 0.0
  %304 = vmatpush.xpose.msra.mxu0 0.0
  %305 = vmatpush.xpose.msra.mxu0 0.0
  %306 = vmatpush.xpose.msra.mxu0 0.0
  %307 = vmatpush.xpose.msra.mxu0 0.0
  %308 = vmatpush.xpose.msra.mxu0 0.0
  %309 = vmatpush.xpose.msra.mxu0 0.0
  %310 = vmatpush.xpose.msra.mxu0 0.0
  %311 = vmatpush.xpose.msra.mxu0 0.0
  %312 = vmatpush.xpose.msra.mxu0 0.0
  %313 = vmatpush.xpose.msra.mxu0 0.0
  %314 = vmatpush.xpose.msra.mxu0 0.0
  %315 = vmatpush.xpose.msra.mxu0 0.0
  %316 = vmatpush.xpose.msra.mxu0 0.0
  %317 = vmatpush.xpose.msra.mxu0 %v300
  %318 = vmatmul.f32.gmra.mxu0 %v298
  %v319 = vpop.f32.mrf.mxu0
  %v320 = vadd.f32 %v185, %v319
  %321 = vdwg.mxu0
  %323 = vrot.lane.b32.xlu0 %v234, 96
  %v324 = vpop.permute.xlu0 %323
  %v325 = vsel %vm243, %v234, 0
  %v327 = vsel %vm243, %v324, 0
  %329 = vmatpush.xpose.msra.mxu0 0.0
  %330 = vmatpush.xpose.msra.mxu0 0.0
  %331 = vmatpush.xpose.msra.mxu0 0.0
  %332 = vmatpush.xpose.msra.mxu0 0.0
  %333 = vmatpush.xpose.msra.mxu0 0.0
  %334 = vmatpush.xpose.msra.mxu0 0.0
  %335 = vmatpush.xpose.msra.mxu0 0.0
  %336 = vmatpush.xpose.msra.mxu0 0.0
  %337 = vmatpush.xpose.msra.mxu0 0.0
  %338 = vmatpush.xpose.msra.mxu0 0.0
  %339 = vmatpush.xpose.msra.mxu0 0.0
  %340 = vmatpush.xpose.msra.mxu0 0.0
  %341 = vmatpush.xpose.msra.mxu0 0.0
  %342 = vmatpush.xpose.msra.mxu0 0.0
  %343 = vmatpush.xpose.msra.mxu0 0.0
  %344 = vmatpush.xpose.msra.mxu0 %v327
  %345 = vmatmul.f32.gmra.mxu0 %v325
  %v346 = vpop.f32.mrf.mxu0
  %v347 = vadd.f32 %v186, %v346
  %348 = vdwg.mxu0
  %vm349 = vcmask 64512
  %v350 = vsel %vm349, %v266, -inf
  %351 = vmax.xlane.f32.xlu0 %v350
  %v352 = vpop.xlane.xlu0 %351
  %v353 = vsel %vm349, %v293, -inf
  %354 = vmax.xlane.f32.xlu0 %v353
  %v355 = vpop.xlane.xlu0 %354
  %v356 = vsel %vm349, %v320, -inf
  %357 = vmax.xlane.f32.xlu0 %v356
  %v358 = vpop.xlane.xlu0 %357
  %v359 = vsel %vm349, %v347, -inf
  %360 = vmax.xlane.f32.xlu0 %v359
  %v361 = vpop.xlane.xlu0 %360
  %v362 = vsub.f32 %v266, %v352
  %v363 = vsub.f32 %v293, %v355
  %v364 = vsub.f32 %v320, %v358
  %v365 = vsub.f32 %v347, %v361
  %v366 = vmul.f32 %v362, 1.442695
  %v367 = vpow.pop %v366
  %v368 = vmul.f32 %v363, 1.442695
  %v369 = vpow.pop %v368
  %v370 = vmul.f32 %v364, 1.442695
  %v371 = vpow.pop %v370
  %v372 = vmul.f32 %v365, 1.442695
  %v373 = vpow.pop %v372
  %v374 = vsel %vm349, %v367, 0.0
  %375 = vadd.xlane.f32.xlu0 %v374
  %v376 = vpop.xlane.xlu0 %375
  %v377 = vsel %vm349, %v369, 0.0
  %378 = vadd.xlane.f32.xlu0 %v377
  %v379 = vpop.xlane.xlu0 %378
  %v380 = vsel %vm349, %v371, 0.0
  %381 = vadd.xlane.f32.xlu0 %v380
  %v382 = vpop.xlane.xlu0 %381
  %v383 = vsel %vm349, %v373, 0.0
  %384 = vadd.xlane.f32.xlu0 %v383
  %v385 = vpop.xlane.xlu0 %384
  %v386 = vrcp.pop %v376
  %v387 = vrcp.pop %v379
  %v388 = vrcp.pop %v382
  %v389 = vrcp.pop %v385
  %v390 = vmul.f32 %v367, %v386
  %v391 = vmul.f32 %v369, %v387
  %v392 = vmul.f32 %v371, %v388
  %v393 = vmul.f32 %v373, %v389
  %394 = vrot.lane.b32.xlu0 %v225, 64
  %v395 = vpop.permute.xlu0 %394
  %v398 = vsel %vm349, %v390, 0
  %400 = vmatpush.msra.mxu0 0.0
  %401 = vmatpush.msra.mxu0 0.0
  %402 = vmatpush.msra.mxu0 0.0
  %403 = vmatpush.msra.mxu0 0.0
  %404 = vmatpush.msra.mxu0 0.0
  %405 = vmatpush.msra.mxu0 0.0
  %406 = vmatpush.msra.mxu0 0.0
  %407 = vmatpush.msra.mxu0 0.0
  %408 = vmatpush.msra.mxu0 0.0
  %409 = vmatpush.msra.mxu0 0.0
  %410 = vmatpush.msra.mxu0 0.0
  %411 = vmatpush.msra.mxu0 0.0
  %412 = vmatpush.msra.mxu0 0.0
  %413 = vmatpush.msra.mxu0 0.0
  %414 = vmatpush.msra.mxu0 0.0
  %415 = vmatpush.msra.mxu0 %v395
  %416 = vmatmul.f32.gmra.mxu0 %v398
  %v417 = vpop.f32.mrf.mxu0
  %v418 = vadd.f32 0.0, %v417
  %419 = vdwg.mxu0
  %420 = vrot.lane.b32.xlu0 %v228, 64
  %v421 = vpop.permute.xlu0 %420
  %v424 = vsel %vm349, %v391, 0
  %426 = vmatpush.msra.mxu0 0.0
  %427 = vmatpush.msra.mxu0 0.0
  %428 = vmatpush.msra.mxu0 0.0
  %429 = vmatpush.msra.mxu0 0.0
  %430 = vmatpush.msra.mxu0 0.0
  %431 = vmatpush.msra.mxu0 0.0
  %432 = vmatpush.msra.mxu0 0.0
  %433 = vmatpush.msra.mxu0 0.0
  %434 = vmatpush.msra.mxu0 0.0
  %435 = vmatpush.msra.mxu0 0.0
  %436 = vmatpush.msra.mxu0 0.0
  %437 = vmatpush.msra.mxu0 0.0
  %438 = vmatpush.msra.mxu0 0.0
  %439 = vmatpush.msra.mxu0 0.0
  %440 = vmatpush.msra.mxu0 0.0
  %441 = vmatpush.msra.mxu0 %v421
  %442 = vmatmul.f32.gmra.mxu0 %v424
  %v443 = vpop.f32.mrf.mxu0
  %v444 = vadd.f32 0.0, %v443
  %445 = vdwg.mxu0
  %446 = vrot.lane.b32.xlu0 %v231, 64
  %v447 = vpop.permute.xlu0 %446
  %v450 = vsel %vm349, %v392, 0
  %452 = vmatpush.msra.mxu0 0.0
  %453 = vmatpush.msra.mxu0 0.0
  %454 = vmatpush.msra.mxu0 0.0
  %455 = vmatpush.msra.mxu0 0.0
  %456 = vmatpush.msra.mxu0 0.0
  %457 = vmatpush.msra.mxu0 0.0
  %458 = vmatpush.msra.mxu0 0.0
  %459 = vmatpush.msra.mxu0 0.0
  %460 = vmatpush.msra.mxu0 0.0
  %461 = vmatpush.msra.mxu0 0.0
  %462 = vmatpush.msra.mxu0 0.0
  %463 = vmatpush.msra.mxu0 0.0
  %464 = vmatpush.msra.mxu0 0.0
  %465 = vmatpush.msra.mxu0 0.0
  %466 = vmatpush.msra.mxu0 0.0
  %467 = vmatpush.msra.mxu0 %v447
  %468 = vmatmul.f32.gmra.mxu0 %v450
  %v469 = vpop.f32.mrf.mxu0
  %v470 = vadd.f32 0.0, %v469
  %471 = vdwg.mxu0
  %472 = vrot.lane.b32.xlu0 %v234, 64
  %v473 = vpop.permute.xlu0 %472
  %v476 = vsel %vm349, %v393, 0
  %478 = vmatpush.msra.mxu0 0.0
  %479 = vmatpush.msra.mxu0 0.0
  %480 = vmatpush.msra.mxu0 0.0
  %481 = vmatpush.msra.mxu0 0.0
  %482 = vmatpush.msra.mxu0 0.0
  %483 = vmatpush.msra.mxu0 0.0
  %484 = vmatpush.msra.mxu0 0.0
  %485 = vmatpush.msra.mxu0 0.0
  %486 = vmatpush.msra.mxu0 0.0
  %487 = vmatpush.msra.mxu0 0.0
  %488 = vmatpush.msra.mxu0 0.0
  %489 = vmatpush.msra.mxu0 0.0
  %490 = vmatpush.msra.mxu0 0.0
  %491 = vmatpush.msra.mxu0 0.0
  %492 = vmatpush.msra.mxu0 0.0
  %493 = vmatpush.msra.mxu0 %v473
  %494 = vmatmul.f32.gmra.mxu0 %v476
  %v495 = vpop.f32.mrf.mxu0
  %v496 = vadd.f32 0.0, %v495
  %497 = vdwg.mxu0
  %498 = vrot.lane.b32.xlu0 %v225, 112
  %v499 = vpop.permute.xlu0 %498
  %500 = vrot.lane.b32.xlu0 %v225, 80
  %v501 = vpop.permute.xlu0 %500
  %v502 = vsel %vm243, %v499, 0
  %v504 = vsel %vm243, %v501, 0
  %506 = vmatpush.xpose.msra.mxu0 0.0
  %507 = vmatpush.xpose.msra.mxu0 0.0
  %508 = vmatpush.xpose.msra.mxu0 0.0
  %509 = vmatpush.xpose.msra.mxu0 0.0
  %510 = vmatpush.xpose.msra.mxu0 0.0
  %511 = vmatpush.xpose.msra.mxu0 0.0
  %512 = vmatpush.xpose.msra.mxu0 0.0
  %513 = vmatpush.xpose.msra.mxu0 0.0
  %514 = vmatpush.xpose.msra.mxu0 0.0
  %515 = vmatpush.xpose.msra.mxu0 0.0
  %516 = vmatpush.xpose.msra.mxu0 0.0
  %517 = vmatpush.xpose.msra.mxu0 0.0
  %518 = vmatpush.xpose.msra.mxu0 0.0
  %519 = vmatpush.xpose.msra.mxu0 0.0
  %520 = vmatpush.xpose.msra.mxu0 0.0
  %521 = vmatpush.xpose.msra.mxu0 %v504
  %522 = vmatmul.f32.gmra.mxu0 %v502
  %v523 = vpop.f32.mrf.mxu0
  %v524 = vadd.f32 %v183, %v523
  %525 = vdwg.mxu0
  %526 = vrot.lane.b32.xlu0 %v228, 112
  %v527 = vpop.permute.xlu0 %526
  %528 = vrot.lane.b32.xlu0 %v228, 80
  %v529 = vpop.permute.xlu0 %528
  %v530 = vsel %vm243, %v527, 0
  %v532 = vsel %vm243, %v529, 0
  %534 = vmatpush.xpose.msra.mxu0 0.0
  %535 = vmatpush.xpose.msra.mxu0 0.0
  %536 = vmatpush.xpose.msra.mxu0 0.0
  %537 = vmatpush.xpose.msra.mxu0 0.0
  %538 = vmatpush.xpose.msra.mxu0 0.0
  %539 = vmatpush.xpose.msra.mxu0 0.0
  %540 = vmatpush.xpose.msra.mxu0 0.0
  %541 = vmatpush.xpose.msra.mxu0 0.0
  %542 = vmatpush.xpose.msra.mxu0 0.0
  %543 = vmatpush.xpose.msra.mxu0 0.0
  %544 = vmatpush.xpose.msra.mxu0 0.0
  %545 = vmatpush.xpose.msra.mxu0 0.0
  %546 = vmatpush.xpose.msra.mxu0 0.0
  %547 = vmatpush.xpose.msra.mxu0 0.0
  %548 = vmatpush.xpose.msra.mxu0 0.0
  %549 = vmatpush.xpose.msra.mxu0 %v532
  %550 = vmatmul.f32.gmra.mxu0 %v530
  %v551 = vpop.f32.mrf.mxu0
  %v552 = vadd.f32 %v184, %v551
  %553 = vdwg.mxu0
  %554 = vrot.lane.b32.xlu0 %v231, 112
  %v555 = vpop.permute.xlu0 %554
  %556 = vrot.lane.b32.xlu0 %v231, 80
  %v557 = vpop.permute.xlu0 %556
  %v558 = vsel %vm243, %v555, 0
  %v560 = vsel %vm243, %v557, 0
  %562 = vmatpush.xpose.msra.mxu0 0.0
  %563 = vmatpush.xpose.msra.mxu0 0.0
  %564 = vmatpush.xpose.msra.mxu0 0.0
  %565 = vmatpush.xpose.msra.mxu0 0.0
  %566 = vmatpush.xpose.msra.mxu0 0.0
  %567 = vmatpush.xpose.msra.mxu0 0.0
  %568 = vmatpush.xpose.msra.mxu0 0.0
  %569 = vmatpush.xpose.msra.mxu0 0.0
  %570 = vmatpush.xpose.msra.mxu0 0.0
  %571 = vmatpush.xpose.msra.mxu0 0.0
  %572 = vmatpush.xpose.msra.mxu0 0.0
  %573 = vmatpush.xpose.msra.mxu0 0.0
  %574 = vmatpush.xpose.msra.mxu0 0.0
  %575 = vmatpush.xpose.msra.mxu0 0.0
  %576 = vmatpush.xpose.msra.mxu0 0.0
  %577 = vmatpush.xpose.msra.mxu0 %v560
  %578 = vmatmul.f32.gmra.mxu0 %v558
  %v579 = vpop.f32.mrf.mxu0
  %v580 = vadd.f32 %v185, %v579
  %581 = vdwg.mxu0
  %582 = vrot.lane.b32.xlu0 %v234, 112
  %v583 = vpop.permute.xlu0 %582
  %584 = vrot.lane.b32.xlu0 %v234, 80
  %v585 = vpop.permute.xlu0 %584
  %v586 = vsel %vm243, %v583, 0
  %v588 = vsel %vm243, %v585, 0
  %590 = vmatpush.xpose.msra.mxu0 0.0
  %591 = vmatpush.xpose.msra.mxu0 0.0
  %592 = vmatpush.xpose.msra.mxu0 0.0
  %593 = vmatpush.xpose.msra.mxu0 0.0
  %594 = vmatpush.xpose.msra.mxu0 0.0
  %595 = vmatpush.xpose.msra.mxu0 0.0
  %596 = vmatpush.xpose.msra.mxu0 0.0
  %597 = vmatpush.xpose.msra.mxu0 0.0
  %598 = vmatpush.xpose.msra.mxu0 0.0
  %599 = vmatpush.xpose.msra.mxu0 0.0
  %600 = vmatpush.xpose.msra.mxu0 0.0
  %601 = vmatpush.xpose.msra.mxu0 0.0
  %602 = vmatpush.xpose.msra.mxu0 0.0
  %603 = vmatpush.xpose.msra.mxu0 0.0
  %604 = vmatpush.xpose.msra.mxu0 0.0
  %605 = vmatpush.xpose.msra.mxu0 %v588
  %606 = vmatmul.f32.gmra.mxu0 %v586
  %v607 = vpop.f32.mrf.mxu0
  %v608 = vadd.f32 %v186, %v607
  %609 = vdwg.mxu0
  %v610 = vsel %vm349, %v524, -inf
  %611 = vmax.xlane.f32.xlu0 %v610
  %v612 = vpop.xlane.xlu0 %611
  %v613 = vsel %vm349, %v552, -inf
  %614 = vmax.xlane.f32.xlu0 %v613
  %v615 = vpop.xlane.xlu0 %614
  %v616 = vsel %vm349, %v580, -inf
  %617 = vmax.xlane.f32.xlu0 %v616
  %v618 = vpop.xlane.xlu0 %617
  %v619 = vsel %vm349, %v608, -inf
  %620 = vmax.xlane.f32.xlu0 %v619
  %v621 = vpop.xlane.xlu0 %620
  %v622 = vsub.f32 %v524, %v612
  %v623 = vsub.f32 %v552, %v615
  %v624 = vsub.f32 %v580, %v618
  %v625 = vsub.f32 %v608, %v621
  %v626 = vmul.f32 %v622, 1.442695
  %v627 = vpow.pop %v626
  %v628 = vmul.f32 %v623, 1.442695
  %v629 = vpow.pop %v628
  %v630 = vmul.f32 %v624, 1.442695
  %v631 = vpow.pop %v630
  %v632 = vmul.f32 %v625, 1.442695
  %v633 = vpow.pop %v632
  %v634 = vsel %vm349, %v627, 0.0
  %635 = vadd.xlane.f32.xlu0 %v634
  %v636 = vpop.xlane.xlu0 %635
  %v637 = vsel %vm349, %v629, 0.0
  %638 = vadd.xlane.f32.xlu0 %v637
  %v639 = vpop.xlane.xlu0 %638
  %v640 = vsel %vm349, %v631, 0.0
  %641 = vadd.xlane.f32.xlu0 %v640
  %v642 = vpop.xlane.xlu0 %641
  %v643 = vsel %vm349, %v633, 0.0
  %644 = vadd.xlane.f32.xlu0 %v643
  %v645 = vpop.xlane.xlu0 %644
  %v646 = vrcp.pop %v636
  %v647 = vrcp.pop %v639
  %v648 = vrcp.pop %v642
  %v649 = vrcp.pop %v645
  %v650 = vmul.f32 %v627, %v646
  %v651 = vmul.f32 %v629, %v647
  %v652 = vmul.f32 %v631, %v648
  %v653 = vmul.f32 %v633, %v649
  %654 = vrot.lane.b32.xlu0 %v225, 48
  %v655 = vpop.permute.xlu0 %654
  %v658 = vsel %vm349, %v650, 0
  %660 = vmatpush.msra.mxu0 0.0
  %661 = vmatpush.msra.mxu0 0.0
  %662 = vmatpush.msra.mxu0 0.0
  %663 = vmatpush.msra.mxu0 0.0
  %664 = vmatpush.msra.mxu0 0.0
  %665 = vmatpush.msra.mxu0 0.0
  %666 = vmatpush.msra.mxu0 0.0
  %667 = vmatpush.msra.mxu0 0.0
  %668 = vmatpush.msra.mxu0 0.0
  %669 = vmatpush.msra.mxu0 0.0
  %670 = vmatpush.msra.mxu0 0.0
  %671 = vmatpush.msra.mxu0 0.0
  %672 = vmatpush.msra.mxu0 0.0
  %673 = vmatpush.msra.mxu0 0.0
  %674 = vmatpush.msra.mxu0 0.0
  %675 = vmatpush.msra.mxu0 %v655
  %676 = vmatmul.f32.gmra.mxu0 %v658
  %v677 = vpop.f32.mrf.mxu0
  %v678 = vadd.f32 0.0, %v677
  %679 = vdwg.mxu0
  %680 = vrot.lane.b32.xlu0 %v228, 48
  %v681 = vpop.permute.xlu0 %680
  %v684 = vsel %vm349, %v651, 0
  %686 = vmatpush.msra.mxu0 0.0
  %687 = vmatpush.msra.mxu0 0.0
  %688 = vmatpush.msra.mxu0 0.0
  %689 = vmatpush.msra.mxu0 0.0
  %690 = vmatpush.msra.mxu0 0.0
  %691 = vmatpush.msra.mxu0 0.0
  %692 = vmatpush.msra.mxu0 0.0
  %693 = vmatpush.msra.mxu0 0.0
  %694 = vmatpush.msra.mxu0 0.0
  %695 = vmatpush.msra.mxu0 0.0
  %696 = vmatpush.msra.mxu0 0.0
  %697 = vmatpush.msra.mxu0 0.0
  %698 = vmatpush.msra.mxu0 0.0
  %699 = vmatpush.msra.mxu0 0.0
  %700 = vmatpush.msra.mxu0 0.0
  %701 = vmatpush.msra.mxu0 %v681
  %702 = vmatmul.f32.gmra.mxu0 %v684
  %v703 = vpop.f32.mrf.mxu0
  %v704 = vadd.f32 0.0, %v703
  %705 = vdwg.mxu0
  %706 = vrot.lane.b32.xlu0 %v231, 48
  %v707 = vpop.permute.xlu0 %706
  %v710 = vsel %vm349, %v652, 0
  %712 = vmatpush.msra.mxu0 0.0
  %713 = vmatpush.msra.mxu0 0.0
  %714 = vmatpush.msra.mxu0 0.0
  %715 = vmatpush.msra.mxu0 0.0
  %716 = vmatpush.msra.mxu0 0.0
  %717 = vmatpush.msra.mxu0 0.0
  %718 = vmatpush.msra.mxu0 0.0
  %719 = vmatpush.msra.mxu0 0.0
  %720 = vmatpush.msra.mxu0 0.0
  %721 = vmatpush.msra.mxu0 0.0
  %722 = vmatpush.msra.mxu0 0.0
  %723 = vmatpush.msra.mxu0 0.0
  %724 = vmatpush.msra.mxu0 0.0
  %725 = vmatpush.msra.mxu0 0.0
  %726 = vmatpush.msra.mxu0 0.0
  %727 = vmatpush.msra.mxu0 %v707
  %728 = vmatmul.f32.gmra.mxu0 %v710
  %v729 = vpop.f32.mrf.mxu0
  %v730 = vadd.f32 0.0, %v729
  %731 = vdwg.mxu0
  %732 = vrot.lane.b32.xlu0 %v234, 48
  %v733 = vpop.permute.xlu0 %732
  %v736 = vsel %vm349, %v653, 0
  %738 = vmatpush.msra.mxu0 0.0
  %739 = vmatpush.msra.mxu0 0.0
  %740 = vmatpush.msra.mxu0 0.0
  %741 = vmatpush.msra.mxu0 0.0
  %742 = vmatpush.msra.mxu0 0.0
  %743 = vmatpush.msra.mxu0 0.0
  %744 = vmatpush.msra.mxu0 0.0
  %745 = vmatpush.msra.mxu0 0.0
  %746 = vmatpush.msra.mxu0 0.0
  %747 = vmatpush.msra.mxu0 0.0
  %748 = vmatpush.msra.mxu0 0.0
  %749 = vmatpush.msra.mxu0 0.0
  %750 = vmatpush.msra.mxu0 0.0
  %751 = vmatpush.msra.mxu0 0.0
  %752 = vmatpush.msra.mxu0 0.0
  %753 = vmatpush.msra.mxu0 %v733
  %754 = vmatmul.f32.gmra.mxu0 %v736
  %v755 = vpop.f32.mrf.mxu0
  %v756 = vadd.f32 0.0, %v755
  %757 = vdwg.mxu0
  %v759 = vsel %vm243, %v678, 0
  %v762 = vsel %vm243, %v704, 0
  %v765 = vsel %vm243, %v730, 0
  %v768 = vsel %vm243, %v756, 0
  %770 = vmatpush.msra.mxu0 0.0
  %771 = vmatpush.msra.mxu0 0.0
  %772 = vmatpush.msra.mxu0 0.0
  %773 = vmatpush.msra.mxu0 0.0
  %774 = vmatpush.msra.mxu0 0.0
  %775 = vmatpush.msra.mxu0 0.0
  %776 = vmatpush.msra.mxu0 0.0
  %777 = vmatpush.msra.mxu0 0.0
  %778 = vmatpush.msra.mxu0 0.0
  %779 = vmatpush.msra.mxu0 0.0
  %780 = vmatpush.msra.mxu0 0.0
  %781 = vmatpush.msra.mxu0 0.0
  %782 = vmatpush.msra.mxu0 0.0
  %783 = vmatpush.msra.mxu0 0.0
  %784 = vmatpush.msra.mxu0 %v239
  %785 = vmatpush.msra.mxu0 %v238
  %786 = vmatmul.f32.gmra.mxu0 %v759
  %v787 = vpop.f32.mrf.mxu0
  %v788 = vadd.f32 0.0, %v787
  %789 = vmatmul.f32.gmra.mxu0 %v762
  %v790 = vpop.f32.mrf.mxu0
  %v791 = vadd.f32 0.0, %v790
  %792 = vmatmul.f32.gmra.mxu0 %v765
  %v793 = vpop.f32.mrf.mxu0
  %v794 = vadd.f32 0.0, %v793
  %795 = vmatmul.f32.gmra.mxu0 %v768
  %v796 = vpop.f32.mrf.mxu0
  %v797 = vadd.f32 0.0, %v796
  %798 = vdwg.mxu0
  %v800 = vsel %vm243, %v418, 0
  %v803 = vsel %vm243, %v444, 0
  %v806 = vsel %vm243, %v470, 0
  %v809 = vsel %vm243, %v496, 0
  %811 = vmatpush.msra.mxu0 0.0
  %812 = vmatpush.msra.mxu0 0.0
  %813 = vmatpush.msra.mxu0 0.0
  %814 = vmatpush.msra.mxu0 0.0
  %815 = vmatpush.msra.mxu0 0.0
  %816 = vmatpush.msra.mxu0 0.0
  %817 = vmatpush.msra.mxu0 0.0
  %818 = vmatpush.msra.mxu0 0.0
  %819 = vmatpush.msra.mxu0 0.0
  %820 = vmatpush.msra.mxu0 0.0
  %821 = vmatpush.msra.mxu0 0.0
  %822 = vmatpush.msra.mxu0 0.0
  %823 = vmatpush.msra.mxu0 0.0
  %824 = vmatpush.msra.mxu0 0.0
  %825 = vmatpush.msra.mxu0 %v237
  %826 = vmatpush.msra.mxu0 %v236
  %827 = vmatmul.f32.gmra.mxu0 %v800
  %v828 = vpop.f32.mrf.mxu0
  %v829 = vadd.f32 %v788, %v828
  %830 = vmatmul.f32.gmra.mxu0 %v803
  %v831 = vpop.f32.mrf.mxu0
  %v832 = vadd.f32 %v791, %v831
  %833 = vmatmul.f32.gmra.mxu0 %v806
  %v834 = vpop.f32.mrf.mxu0
  %v835 = vadd.f32 %v794, %v834
  %836 = vmatmul.f32.gmra.mxu0 %v809
  %v837 = vpop.f32.mrf.mxu0
  %v838 = vadd.f32 %v797, %v837
  %839 = vdwg.mxu0
  %v840 = vld [vmem:[%s7] sm:$0x1]
  %v842 = vperm.slane %v840, 0
  %v844 = vadd.f32 %v829, %v842
  %v845 = vadd.f32 %v832, %v842
  %v846 = vadd.f32 %v835, %v842
  %v847 = vadd.f32 %v838, %v842
  %v848 = vadd.f32 %v844, %v179
  %v849 = vadd.f32 %v845, %v180
  %v850 = vadd.f32 %v846, %v181
  %v851 = vadd.f32 %v847, %v182
  %v852 = vld [vmem:[%s8] sm:$0x1]
  %v853 = vld [vmem:[%s9] sm:$0x1]
  %v854 = vsel %vm73, %v848, 0.0
  %855 = vadd.xlane.f32.xlu0 %v854
  %v856 = vpop.xlane.xlu0 %855
  %v857 = vsel %vm73, %v849, 0.0
  %858 = vadd.xlane.f32.xlu0 %v857
  %v859 = vpop.xlane.xlu0 %858
  %v860 = vsel %vm73, %v850, 0.0
  %861 = vadd.xlane.f32.xlu0 %v860
  %v862 = vpop.xlane.xlu0 %861
  %v863 = vsel %vm73, %v851, 0.0
  %864 = vadd.xlane.f32.xlu0 %v863
  %v865 = vpop.xlane.xlu0 %864
  %v866 = vmul.f32 %v856, %v92
  %v867 = vmul.f32 %v859, %v92
  %v868 = vmul.f32 %v862, %v92
  %v869 = vmul.f32 %v865, %v92
  %v870 = vsub.f32 %v848, %v866
  %v871 = vsub.f32 %v849, %v867
  %v872 = vsub.f32 %v850, %v868
  %v873 = vsub.f32 %v851, %v869
  %v874 = vmul.f32 %v870, %v870
  %v875 = vmul.f32 %v871, %v871
  %v876 = vmul.f32 %v872, %v872
  %v877 = vmul.f32 %v873, %v873
  %v878 = vsel %vm73, %v874, 0.0
  %879 = vadd.xlane.f32.xlu0 %v878
  %v880 = vpop.xlane.xlu0 %879
  %v881 = vsel %vm73, %v875, 0.0
  %882 = vadd.xlane.f32.xlu0 %v881
  %v883 = vpop.xlane.xlu0 %882
  %v884 = vsel %vm73, %v876, 0.0
  %885 = vadd.xlane.f32.xlu0 %v884
  %v886 = vpop.xlane.xlu0 %885
  %v887 = vsel %vm73, %v877, 0.0
  %888 = vadd.xlane.f32.xlu0 %v887
  %v889 = vpop.xlane.xlu0 %888
  %v890 = vmul.f32 %v880, %v92
  %v891 = vmul.f32 %v883, %v92
  %v892 = vmul.f32 %v886, %v92
  %v893 = vmul.f32 %v889, %v92
  %v894 = vadd.f32 %v890, 1e-05
  %v895 = vadd.f32 %v891, 1e-05
  %v896 = vadd.f32 %v892, 1e-05
  %v897 = vadd.f32 %v893, 1e-05
  %v898 = vrsqrt.pop %v894
  %v899 = vmul.f32 %v898, %v894
  %v900 = vmul.f32 %v899, %v898
  %v901 = vmul.f32 0.5, %v900
  %v902 = vsub.f32 1.5, %v901
  %v903 = vmul.f32 %v898, %v902
  %vm904 = vweird.f32 %v894
  %vm905 = vweird.f32 %v898
  %vm906 = vmor %vm904, %vm905
  %v907 = vsel %vm906, %v898, %v903
  %v908 = vrsqrt.pop %v895
  %v909 = vmul.f32 %v908, %v895
  %v910 = vmul.f32 %v909, %v908
  %v911 = vmul.f32 0.5, %v910
  %v912 = vsub.f32 1.5, %v911
  %v913 = vmul.f32 %v908, %v912
  %vm914 = vweird.f32 %v895
  %vm915 = vweird.f32 %v908
  %vm916 = vmor %vm914, %vm915
  %v917 = vsel %vm916, %v908, %v913
  %v918 = vrsqrt.pop %v896
  %v919 = vmul.f32 %v918, %v896
  %v920 = vmul.f32 %v919, %v918
  %v921 = vmul.f32 0.5, %v920
  %v922 = vsub.f32 1.5, %v921
  %v923 = vmul.f32 %v918, %v922
  %vm924 = vweird.f32 %v896
  %vm925 = vweird.f32 %v918
  %vm926 = vmor %vm924, %vm925
  %v927 = vsel %vm926, %v918, %v923
  %v928 = vrsqrt.pop %v897
  %v929 = vmul.f32 %v928, %v897
  %v930 = vmul.f32 %v929, %v928
  %v931 = vmul.f32 0.5, %v930
  %v932 = vsub.f32 1.5, %v931
  %v933 = vmul.f32 %v928, %v932
  %vm934 = vweird.f32 %v897
  %vm935 = vweird.f32 %v928
  %vm936 = vmor %vm934, %vm935
  %v937 = vsel %vm936, %v928, %v933
  %v938 = vmul.f32 %v870, %v907
  %v939 = vmul.f32 %v871, %v917
  %v940 = vmul.f32 %v872, %v927
  %v941 = vmul.f32 %v873, %v937
  %v943 = vperm.slane %v852, 0
  %v945 = vmul.f32 %v938, %v943
  %v946 = vmul.f32 %v939, %v943
  %v947 = vmul.f32 %v940, %v943
  %v948 = vmul.f32 %v941, %v943
  %v950 = vperm.slane %v853, 0
  %v952 = vadd.f32 %v945, %v950
  %v953 = vadd.f32 %v946, %v950
  %v954 = vadd.f32 %v947, %v950
  %v955 = vadd.f32 %v948, %v950
  %v956 = vld [vmem:[%s10] sm:$0xff]
  %v957 = vld [vmem:[%s10 + $0x8] sm:$0xff]
  %v958 = vld [vmem:[%s10 + $0x10] sm:$0xff]
  %v959 = vld [vmem:[%s10 + $0x18] sm:$0xff]
  %v960 = vld [vmem:[%s11] sm:$0x1]
  %v962 = vperm.slane %v960, 0
  %v965 = vsel %vm73, %v952, 0
  %v968 = vsel %vm73, %v953, 0
  %v971 = vsel %vm73, %v954, 0
  %v974 = vsel %vm73, %v955, 0
  %976 = vmatpush.msra.mxu0 0.0
  %977 = vmatpush.msra.mxu0 0.0
  %978 = vmatpush.msra.mxu0 0.0
  %979 = vmatpush.msra.mxu0 0.0
  %980 = vmatpush.msra.mxu0 0.0
  %981 = vmatpush.msra.mxu0 0.0
  %982 = vmatpush.msra.mxu0 0.0
  %983 = vmatpush.msra.mxu0 0.0
  %984 = vmatpush.msra.mxu0 0.0
  %985 = vmatpush.msra.mxu0 0.0
  %986 = vmatpush.msra.mxu0 0.0
  %987 = vmatpush.msra.mxu0 0.0
  %988 = vmatpush.msra.mxu0 %v959
  %989 = vmatpush.msra.mxu0 %v958
  %990 = vmatpush.msra.mxu0 %v957
  %991 = vmatpush.msra.mxu0 %v956
  %992 = vmatmul.f32.gmra.mxu0 %v965
  %v993 = vpop.f32.mrf.mxu0
  %v994 = vadd.f32 %v962, %v993
  %995 = vmatmul.f32.gmra.mxu0 %v968
  %v996 = vpop.f32.mrf.mxu0
  %v997 = vadd.f32 %v962, %v996
  %998 = vmatmul.f32.gmra.mxu0 %v971
  %v999 = vpop.f32.mrf.mxu0
  %v1000 = vadd.f32 %v962, %v999
  %1001 = vmatmul.f32.gmra.mxu0 %v974
  %v1002 = vpop.f32.mrf.mxu0
  %v1003 = vadd.f32 %v962, %v1002
  %1004 = vdwg.mxu0
  %v1005 = vmul.f32 %v994, %v994
  %v1006 = vmul.f32 %v997, %v997
  %v1007 = vmul.f32 %v1000, %v1000
  %v1008 = vmul.f32 %v1003, %v1003
  %v1009 = vmul.f32 %v994, %v1005
  %v1010 = vmul.f32 %v997, %v1006
  %v1011 = vmul.f32 %v1000, %v1007
  %v1012 = vmul.f32 %v1003, %v1008
  %v1013 = vmul.f32 %v1009, 0.044715
  %v1014 = vmul.f32 %v1010, 0.044715
  %v1015 = vmul.f32 %v1011, 0.044715
  %v1016 = vmul.f32 %v1012, 0.044715
  %v1017 = vadd.f32 %v994, %v1013
  %v1018 = vadd.f32 %v997, %v1014
  %v1019 = vadd.f32 %v1000, %v1015
  %v1020 = vadd.f32 %v1003, %v1016
  %v1021 = vmul.f32 %v1017, 0.7978846
  %v1022 = vmul.f32 %v1018, 0.7978846
  %v1023 = vmul.f32 %v1019, 0.7978846
  %v1024 = vmul.f32 %v1020, 0.7978846
  %v1025 = vtanh.pop %v1021
  %v1026 = vtanh.pop %v1022
  %v1027 = vtanh.pop %v1023
  %v1028 = vtanh.pop %v1024
  %v1029 = vadd.f32 %v1025, 1.0
  %v1030 = vadd.f32 %v1026, 1.0
  %v1031 = vadd.f32 %v1027, 1.0
  %v1032 = vadd.f32 %v1028, 1.0
  %v1033 = vmul.f32 %v1029, 0.5
  %v1034 = vmul.f32 %v1030, 0.5
  %v1035 = vmul.f32 %v1031, 0.5
  %v1036 = vmul.f32 %v1032, 0.5
  %v1037 = vmul.f32 %v994, %v1033
  %v1038 = vmul.f32 %v997, %v1034
  %v1039 = vmul.f32 %v1000, %v1035
  %v1040 = vmul.f32 %v1003, %v1036
  %v1041 = vld [vmem:[%s12] sm:$0xff]
  %v1042 = vld [vmem:[%s12 + $0x8] sm:$0xff]
  %v1043 = vld [vmem:[%s12 + $0x10] sm:$0xff]
  %v1044 = vld [vmem:[%s12 + $0x18] sm:$0xff]
  %v1045 = vld [vmem:[%s12 + $0x20] sm:$0xff]
  %v1046 = vld [vmem:[%s12 + $0x28] sm:$0xff]
  %v1047 = vld [vmem:[%s12 + $0x30] sm:$0xff]
  %v1048 = vld [vmem:[%s12 + $0x38] sm:$0xff]
  %v1049 = vld [vmem:[%s13] sm:$0x1]
  %v1051 = vperm.slane %v1049, 0
  %vm1053 = vcmask 523264
  %v1055 = vsel %vm1053, %v1037, 0
  %v1058 = vsel %vm1053, %v1038, 0
  %v1061 = vsel %vm1053, %v1039, 0
  %v1064 = vsel %vm1053, %v1040, 0
  %1066 = vmatpush.msra.mxu0 0.0
  %1067 = vmatpush.msra.mxu0 0.0
  %1068 = vmatpush.msra.mxu0 0.0
  %1069 = vmatpush.msra.mxu0 0.0
  %1070 = vmatpush.msra.mxu0 0.0
  %1071 = vmatpush.msra.mxu0 0.0
  %1072 = vmatpush.msra.mxu0 0.0
  %1073 = vmatpush.msra.mxu0 0.0
  %1074 = vmatpush.msra.mxu0 %v1048
  %1075 = vmatpush.msra.mxu0 %v1047
  %1076 = vmatpush.msra.mxu0 %v1046
  %1077 = vmatpush.msra.mxu0 %v1045
  %1078 = vmatpush.msra.mxu0 %v1044
  %1079 = vmatpush.msra.mxu0 %v1043
  %1080 = vmatpush.msra.mxu0 %v1042
  %1081 = vmatpush.msra.mxu0 %v1041
  %1082 = vmatmul.f32.gmra.mxu0 %v1055
  %v1083 = vpop.f32.mrf.mxu0
  %v1084 = vadd.f32 %v1051, %v1083
  %1085 = vmatmul.f32.gmra.mxu0 %v1058
  %v1086 = vpop.f32.mrf.mxu0
  %v1087 = vadd.f32 %v1051, %v1086
  %1088 = vmatmul.f32.gmra.mxu0 %v1061
  %v1089 = vpop.f32.mrf.mxu0
  %v1090 = vadd.f32 %v1051, %v1089
  %1091 = vmatmul.f32.gmra.mxu0 %v1064
  %v1092 = vpop.f32.mrf.mxu0
  %v1093 = vadd.f32 %v1051, %v1092
  %1094 = vdwg.mxu0
  %v1095 = vadd.f32 %v1084, %v952
  %v1096 = vadd.f32 %v1087, %v953
  %v1097 = vadd.f32 %v1090, %v954
  %v1098 = vadd.f32 %v1093, %v955
  %v1099 = vld [vmem:[%s14] sm:$0x1]
  %v1100 = vld [vmem:[%s15] sm:$0x1]
  %v1101 = vsel %vm73, %v1095, 0.0
  %1102 = vadd.xlane.f32.xlu0 %v1101
  %v1103 = vpop.xlane.xlu0 %1102
  %v1104 = vsel %vm73, %v1096, 0.0
  %1105 = vadd.xlane.f32.xlu0 %v1104
  %v1106 = vpop.xlane.xlu0 %1105
  %v1107 = vsel %vm73, %v1097, 0.0
  %1108 = vadd.xlane.f32.xlu0 %v1107
  %v1109 = vpop.xlane.xlu0 %1108
  %v1110 = vsel %vm73, %v1098, 0.0
  %1111 = vadd.xlane.f32.xlu0 %v1110
  %v1112 = vpop.xlane.xlu0 %1111
  %v1113 = vmul.f32 %v1103, %v92
  %v1114 = vmul.f32 %v1106, %v92
  %v1115 = vmul.f32 %v1109, %v92
  %v1116 = vmul.f32 %v1112, %v92
  %v1117 = vsub.f32 %v1095, %v1113
  %v1118 = vsub.f32 %v1096, %v1114
  %v1119 = vsub.f32 %v1097, %v1115
  %v1120 = vsub.f32 %v1098, %v1116
  %v1121 = vmul.f32 %v1117, %v1117
  %v1122 = vmul.f32 %v1118, %v1118
  %v1123 = vmul.f32 %v1119, %v1119
  %v1124 = vmul.f32 %v1120, %v1120
  %v1125 = vsel %vm73, %v1121, 0.0
  %1126 = vadd.xlane.f32.xlu0 %v1125
  %v1127 = vpop.xlane.xlu0 %1126
  %v1128 = vsel %vm73, %v1122, 0.0
  %1129 = vadd.xlane.f32.xlu0 %v1128
  %v1130 = vpop.xlane.xlu0 %1129
  %v1131 = vsel %vm73, %v1123, 0.0
  %1132 = vadd.xlane.f32.xlu0 %v1131
  %v1133 = vpop.xlane.xlu0 %1132
  %v1134 = vsel %vm73, %v1124, 0.0
  %1135 = vadd.xlane.f32.xlu0 %v1134
  %v1136 = vpop.xlane.xlu0 %1135
  %v1137 = vmul.f32 %v1127, %v92
  %v1138 = vmul.f32 %v1130, %v92
  %v1139 = vmul.f32 %v1133, %v92
  %v1140 = vmul.f32 %v1136, %v92
  %v1141 = vadd.f32 %v1137, 1e-05
  %v1142 = vadd.f32 %v1138, 1e-05
  %v1143 = vadd.f32 %v1139, 1e-05
  %v1144 = vadd.f32 %v1140, 1e-05
  %v1145 = vrsqrt.pop %v1141
  %v1146 = vmul.f32 %v1145, %v1141
  %v1147 = vmul.f32 %v1146, %v1145
  %v1148 = vmul.f32 0.5, %v1147
  %v1149 = vsub.f32 1.5, %v1148
  %v1150 = vmul.f32 %v1145, %v1149
  %vm1151 = vweird.f32 %v1141
  %vm1152 = vweird.f32 %v1145
  %vm1153 = vmor %vm1151, %vm1152
  %v1154 = vsel %vm1153, %v1145, %v1150
  %v1155 = vrsqrt.pop %v1142
  %v1156 = vmul.f32 %v1155, %v1142
  %v1157 = vmul.f32 %v1156, %v1155
  %v1158 = vmul.f32 0.5, %v1157
  %v1159 = vsub.f32 1.5, %v1158
  %v1160 = vmul.f32 %v1155, %v1159
  %vm1161 = vweird.f32 %v1142
  %vm1162 = vweird.f32 %v1155
  %vm1163 = vmor %vm1161, %vm1162
  %v1164 = vsel %vm1163, %v1155, %v1160
  %v1165 = vrsqrt.pop %v1143
  %v1166 = vmul.f32 %v1165, %v1143
  %v1167 = vmul.f32 %v1166, %v1165
  %v1168 = vmul.f32 0.5, %v1167
  %v1169 = vsub.f32 1.5, %v1168
  %v1170 = vmul.f32 %v1165, %v1169
  %vm1171 = vweird.f32 %v1143
  %vm1172 = vweird.f32 %v1165
  %vm1173 = vmor %vm1171, %vm1172
  %v1174 = vsel %vm1173, %v1165, %v1170
  %v1175 = vrsqrt.pop %v1144
  %v1176 = vmul.f32 %v1175, %v1144
  %v1177 = vmul.f32 %v1176, %v1175
  %v1178 = vmul.f32 0.5, %v1177
  %v1179 = vsub.f32 1.5, %v1178
  %v1180 = vmul.f32 %v1175, %v1179
  %vm1181 = vweird.f32 %v1144
  %vm1182 = vweird.f32 %v1175
  %vm1183 = vmor %vm1181, %vm1182
  %v1184 = vsel %vm1183, %v1175, %v1180
  %v1185 = vmul.f32 %v1117, %v1154
  %v1186 = vmul.f32 %v1118, %v1164
  %v1187 = vmul.f32 %v1119, %v1174
  %v1188 = vmul.f32 %v1120, %v1184
  %v1190 = vperm.slane %v1099, 0
  %v1192 = vmul.f32 %v1185, %v1190
  %v1193 = vmul.f32 %v1186, %v1190
  %v1194 = vmul.f32 %v1187, %v1190
  %v1195 = vmul.f32 %v1188, %v1190
  %v1197 = vperm.slane %v1100, 0
  %v1199 = vadd.f32 %v1192, %v1197
  %v1200 = vadd.f32 %v1193, %v1197
  %v1201 = vadd.f32 %v1194, %v1197
  %v1202 = vadd.f32 %v1195, %v1197
  %s1203 = scalar_lea.vmem %s4, 32
  %v1204 = vld [vmem:[%s1203] sm:$0xff]
  %v1205 = vld [vmem:[%s1203 + $0x8] sm:$0xff]
  %v1206 = vld [vmem:[%s1203 + $0x10] sm:$0xff]
  %v1207 = vld [vmem:[%s1203 + $0x18] sm:$0xff]
  %s1208 = scalar_lea.vmem %s5, 1
  %v1209 = vld [vmem:[%s1208] sm:$0x1]
  %v1211 = vperm.slane %v1209, 0
  %v1214 = vsel %vm73, %v1199, 0
  %v1217 = vsel %vm73, %v1200, 0
  %v1220 = vsel %vm73, %v1201, 0
  %v1223 = vsel %vm73, %v1202, 0
  %1225 = vmatpush.msra.mxu0 0.0
  %1226 = vmatpush.msra.mxu0 0.0
  %1227 = vmatpush.msra.mxu0 0.0
  %1228 = vmatpush.msra.mxu0 0.0
  %1229 = vmatpush.msra.mxu0 0.0
  %1230 = vmatpush.msra.mxu0 0.0
  %1231 = vmatpush.msra.mxu0 0.0
  %1232 = vmatpush.msra.mxu0 0.0
  %1233 = vmatpush.msra.mxu0 0.0
  %1234 = vmatpush.msra.mxu0 0.0
  %1235 = vmatpush.msra.mxu0 0.0
  %1236 = vmatpush.msra.mxu0 0.0
  %1237 = vmatpush.msra.mxu0 %v1207
  %1238 = vmatpush.msra.mxu0 %v1206
  %1239 = vmatpush.msra.mxu0 %v1205
  %1240 = vmatpush.msra.mxu0 %v1204
  %1241 = vmatmul.f32.gmra.mxu0 %v1214
  %v1242 = vpop.f32.mrf.mxu0
  %v1243 = vadd.f32 %v1211, %v1242
  %1244 = vmatmul.f32.gmra.mxu0 %v1217
  %v1245 = vpop.f32.mrf.mxu0
  %v1246 = vadd.f32 %v1211, %v1245
  %1247 = vmatmul.f32.gmra.mxu0 %v1220
  %v1248 = vpop.f32.mrf.mxu0
  %v1249 = vadd.f32 %v1211, %v1248
  %1250 = vmatmul.f32.gmra.mxu0 %v1223
  %v1251 = vpop.f32.mrf.mxu0
  %v1252 = vadd.f32 %v1211, %v1251
  %1253 = vdwg.mxu0
  %s1254 = scalar_lea.vmem %s6, 32
  %v1255 = vld [vmem:[%s1254] sm:$0xff]
  %v1256 = vld [vmem:[%s1254 + $0x8] sm:$0xff]
  %v1257 = vld [vmem:[%s1254 + $0x10] sm:$0xff]
  %v1258 = vld [vmem:[%s1254 + $0x18] sm:$0xff]
  %1260 = vrot.lane.b32.xlu0 %v1243, 96
  %v1261 = vpop.permute.xlu0 %1260
  %v1262 = vsel %vm243, %v1243, 0
  %v1264 = vsel %vm243, %v1261, 0
  %1266 = vmatpush.xpose.msra.mxu0 0.0
  %1267 = vmatpush.xpose.msra.mxu0 0.0
  %1268 = vmatpush.xpose.msra.mxu0 0.0
  %1269 = vmatpush.xpose.msra.mxu0 0.0
  %1270 = vmatpush.xpose.msra.mxu0 0.0
  %1271 = vmatpush.xpose.msra.mxu0 0.0
  %1272 = vmatpush.xpose.msra.mxu0 0.0
  %1273 = vmatpush.xpose.msra.mxu0 0.0
  %1274 = vmatpush.xpose.msra.mxu0 0.0
  %1275 = vmatpush.xpose.msra.mxu0 0.0
  %1276 = vmatpush.xpose.msra.mxu0 0.0
  %1277 = vmatpush.xpose.msra.mxu0 0.0
  %1278 = vmatpush.xpose.msra.mxu0 0.0
  %1279 = vmatpush.xpose.msra.mxu0 0.0
  %1280 = vmatpush.xpose.msra.mxu0 0.0
  %1281 = vmatpush.xpose.msra.mxu0 %v1264
  %1282 = vmatmul.f32.gmra.mxu0 %v1262
  %v1283 = vpop.f32.mrf.mxu0
  %v1284 = vadd.f32 %v183, %v1283
  %1285 = vdwg.mxu0
  %1287 = vrot.lane.b32.xlu0 %v1246, 96
  %v1288 = vpop.permute.xlu0 %1287
  %v1289 = vsel %vm243, %v1246, 0
  %v1291 = vsel %vm243, %v1288, 0
  %1293 = vmatpush.xpose.msra.mxu0 0.0
  %1294 = vmatpush.xpose.msra.mxu0 0.0
  %1295 = vmatpush.xpose.msra.mxu0 0.0
  %1296 = vmatpush.xpose.msra.mxu0 0.0
  %1297 = vmatpush.xpose.msra.mxu0 0.0
  %1298 = vmatpush.xpose.msra.mxu0 0.0
  %1299 = vmatpush.xpose.msra.mxu0 0.0
  %1300 = vmatpush.xpose.msra.mxu0 0.0
  %1301 = vmatpush.xpose.msra.mxu0 0.0
  %1302 = vmatpush.xpose.msra.mxu0 0.0
  %1303 = vmatpush.xpose.msra.mxu0 0.0
  %1304 = vmatpush.xpose.msra.mxu0 0.0
  %1305 = vmatpush.xpose.msra.mxu0 0.0
  %1306 = vmatpush.xpose.msra.mxu0 0.0
  %1307 = vmatpush.xpose.msra.mxu0 0.0
  %1308 = vmatpush.xpose.msra.mxu0 %v1291
  %1309 = vmatmul.f32.gmra.mxu0 %v1289
  %v1310 = vpop.f32.mrf.mxu0
  %v1311 = vadd.f32 %v184, %v1310
  %1312 = vdwg.mxu0
  %1314 = vrot.lane.b32.xlu0 %v1249, 96
  %v1315 = vpop.permute.xlu0 %1314
  %v1316 = vsel %vm243, %v1249, 0
  %v1318 = vsel %vm243, %v1315, 0
  %1320 = vmatpush.xpose.msra.mxu0 0.0
  %1321 = vmatpush.xpose.msra.mxu0 0.0
  %1322 = vmatpush.xpose.msra.mxu0 0.0
  %1323 = vmatpush.xpose.msra.mxu0 0.0
  %1324 = vmatpush.xpose.msra.mxu0 0.0
  %1325 = vmatpush.xpose.msra.mxu0 0.0
  %1326 = vmatpush.xpose.msra.mxu0 0.0
  %1327 = vmatpush.xpose.msra.mxu0 0.0
  %1328 = vmatpush.xpose.msra.mxu0 0.0
  %1329 = vmatpush.xpose.msra.mxu0 0.0
  %1330 = vmatpush.xpose.msra.mxu0 0.0
  %1331 = vmatpush.xpose.msra.mxu0 0.0
  %1332 = vmatpush.xpose.msra.mxu0 0.0
  %1333 = vmatpush.xpose.msra.mxu0 0.0
  %1334 = vmatpush.xpose.msra.mxu0 0.0
  %1335 = vmatpush.xpose.msra.mxu0 %v1318
  %1336 = vmatmul.f32.gmra.mxu0 %v1316
  %v1337 = vpop.f32.mrf.mxu0
  %v1338 = vadd.f32 %v185, %v1337
  %1339 = vdwg.mxu0
  %1341 = vrot.lane.b32.xlu0 %v1252, 96
  %v1342 = vpop.permute.xlu0 %1341
  %v1343 = vsel %vm243, %v1252, 0
  %v1345 = vsel %vm243, %v1342, 0
  %1347 = vmatpush.xpose.msra.mxu0 0.0
  %1348 = vmatpush.xpose.msra.mxu0 0.0
  %1349 = vmatpush.xpose.msra.mxu0 0.0
  %1350 = vmatpush.xpose.msra.mxu0 0.0
  %1351 = vmatpush.xpose.msra.mxu0 0.0
  %1352 = vmatpush.xpose.msra.mxu0 0.0
  %1353 = vmatpush.xpose.msra.mxu0 0.0
  %1354 = vmatpush.xpose.msra.mxu0 0.0
  %1355 = vmatpush.xpose.msra.mxu0 0.0
  %1356 = vmatpush.xpose.msra.mxu0 0.0
  %1357 = vmatpush.xpose.msra.mxu0 0.0
  %1358 = vmatpush.xpose.msra.mxu0 0.0
  %1359 = vmatpush.xpose.msra.mxu0 0.0
  %1360 = vmatpush.xpose.msra.mxu0 0.0
  %1361 = vmatpush.xpose.msra.mxu0 0.0
  %1362 = vmatpush.xpose.msra.mxu0 %v1345
  %1363 = vmatmul.f32.gmra.mxu0 %v1343
  %v1364 = vpop.f32.mrf.mxu0
  %v1365 = vadd.f32 %v186, %v1364
  %1366 = vdwg.mxu0
  %v1367 = vsel %vm349, %v1284, -inf
  %1368 = vmax.xlane.f32.xlu0 %v1367
  %v1369 = vpop.xlane.xlu0 %1368
  %v1370 = vsel %vm349, %v1311, -inf
  %1371 = vmax.xlane.f32.xlu0 %v1370
  %v1372 = vpop.xlane.xlu0 %1371
  %v1373 = vsel %vm349, %v1338, -inf
  %1374 = vmax.xlane.f32.xlu0 %v1373
  %v1375 = vpop.xlane.xlu0 %1374
  %v1376 = vsel %vm349, %v1365, -inf
  %1377 = vmax.xlane.f32.xlu0 %v1376
  %v1378 = vpop.xlane.xlu0 %1377
  %v1379 = vsub.f32 %v1284, %v1369
  %v1380 = vsub.f32 %v1311, %v1372
  %v1381 = vsub.f32 %v1338, %v1375
  %v1382 = vsub.f32 %v1365, %v1378
  %v1383 = vmul.f32 %v1379, 1.442695
  %v1384 = vpow.pop %v1383
  %v1385 = vmul.f32 %v1380, 1.442695
  %v1386 = vpow.pop %v1385
  %v1387 = vmul.f32 %v1381, 1.442695
  %v1388 = vpow.pop %v1387
  %v1389 = vmul.f32 %v1382, 1.442695
  %v1390 = vpow.pop %v1389
  %v1391 = vsel %vm349, %v1384, 0.0
  %1392 = vadd.xlane.f32.xlu0 %v1391
  %v1393 = vpop.xlane.xlu0 %1392
  %v1394 = vsel %vm349, %v1386, 0.0
  %1395 = vadd.xlane.f32.xlu0 %v1394
  %v1396 = vpop.xlane.xlu0 %1395
  %v1397 = vsel %vm349, %v1388, 0.0
  %1398 = vadd.xlane.f32.xlu0 %v1397
  %v1399 = vpop.xlane.xlu0 %1398
  %v1400 = vsel %vm349, %v1390, 0.0
  %1401 = vadd.xlane.f32.xlu0 %v1400
  %v1402 = vpop.xlane.xlu0 %1401
  %v1403 = vrcp.pop %v1393
  %v1404 = vrcp.pop %v1396
  %v1405 = vrcp.pop %v1399
  %v1406 = vrcp.pop %v1402
  %v1407 = vmul.f32 %v1384, %v1403
  %v1408 = vmul.f32 %v1386, %v1404
  %v1409 = vmul.f32 %v1388, %v1405
  %v1410 = vmul.f32 %v1390, %v1406
  %1411 = vrot.lane.b32.xlu0 %v1243, 64
  %v1412 = vpop.permute.xlu0 %1411
  %v1415 = vsel %vm349, %v1407, 0
  %1417 = vmatpush.msra.mxu0 0.0
  %1418 = vmatpush.msra.mxu0 0.0
  %1419 = vmatpush.msra.mxu0 0.0
  %1420 = vmatpush.msra.mxu0 0.0
  %1421 = vmatpush.msra.mxu0 0.0
  %1422 = vmatpush.msra.mxu0 0.0
  %1423 = vmatpush.msra.mxu0 0.0
  %1424 = vmatpush.msra.mxu0 0.0
  %1425 = vmatpush.msra.mxu0 0.0
  %1426 = vmatpush.msra.mxu0 0.0
  %1427 = vmatpush.msra.mxu0 0.0
  %1428 = vmatpush.msra.mxu0 0.0
  %1429 = vmatpush.msra.mxu0 0.0
  %1430 = vmatpush.msra.mxu0 0.0
  %1431 = vmatpush.msra.mxu0 0.0
  %1432 = vmatpush.msra.mxu0 %v1412
  %1433 = vmatmul.f32.gmra.mxu0 %v1415
  %v1434 = vpop.f32.mrf.mxu0
  %v1435 = vadd.f32 0.0, %v1434
  %1436 = vdwg.mxu0
  %1437 = vrot.lane.b32.xlu0 %v1246, 64
  %v1438 = vpop.permute.xlu0 %1437
  %v1441 = vsel %vm349, %v1408, 0
  %1443 = vmatpush.msra.mxu0 0.0
  %1444 = vmatpush.msra.mxu0 0.0
  %1445 = vmatpush.msra.mxu0 0.0
  %1446 = vmatpush.msra.mxu0 0.0
  %1447 = vmatpush.msra.mxu0 0.0
  %1448 = vmatpush.msra.mxu0 0.0
  %1449 = vmatpush.msra.mxu0 0.0
  %1450 = vmatpush.msra.mxu0 0.0
  %1451 = vmatpush.msra.mxu0 0.0
  %1452 = vmatpush.msra.mxu0 0.0
  %1453 = vmatpush.msra.mxu0 0.0
  %1454 = vmatpush.msra.mxu0 0.0
  %1455 = vmatpush.msra.mxu0 0.0
  %1456 = vmatpush.msra.mxu0 0.0
  %1457 = vmatpush.msra.mxu0 0.0
  %1458 = vmatpush.msra.mxu0 %v1438
  %1459 = vmatmul.f32.gmra.mxu0 %v1441
  %v1460 = vpop.f32.mrf.mxu0
  %v1461 = vadd.f32 0.0, %v1460
  %1462 = vdwg.mxu0
  %1463 = vrot.lane.b32.xlu0 %v1249, 64
  %v1464 = vpop.permute.xlu0 %1463
  %v1467 = vsel %vm349, %v1409, 0
  %1469 = vmatpush.msra.mxu0 0.0
  %1470 = vmatpush.msra.mxu0 0.0
  %1471 = vmatpush.msra.mxu0 0.0
  %1472 = vmatpush.msra.mxu0 0.0
  %1473 = vmatpush.msra.mxu0 0.0
  %1474 = vmatpush.msra.mxu0 0.0
  %1475 = vmatpush.msra.mxu0 0.0
  %1476 = vmatpush.msra.mxu0 0.0
  %1477 = vmatpush.msra.mxu0 0.0
  %1478 = vmatpush.msra.mxu0 0.0
  %1479 = vmatpush.msra.mxu0 0.0
  %1480 = vmatpush.msra.mxu0 0.0
  %1481 = vmatpush.msra.mxu0 0.0
  %1482 = vmatpush.msra.mxu0 0.0
  %1483 = vmatpush.msra.mxu0 0.0
  %1484 = vmatpush.msra.mxu0 %v1464
  %1485 = vmatmul.f32.gmra.mxu0 %v1467
  %v1486 = vpop.f32.mrf.mxu0
  %v1487 = vadd.f32 0.0, %v1486
  %1488 = vdwg.mxu0
  %1489 = vrot.lane.b32.xlu0 %v1252, 64
  %v1490 = vpop.permute.xlu0 %1489
  %v1493 = vsel %vm349, %v1410, 0
  %1495 = vmatpush.msra.mxu0 0.0
  %1496 = vmatpush.msra.mxu0 0.0
  %1497 = vmatpush.msra.mxu0 0.0
  %1498 = vmatpush.msra.mxu0 0.0
  %1499 = vmatpush.msra.mxu0 0.0
  %1500 = vmatpush.msra.mxu0 0.0
  %1501 = vmatpush.msra.mxu0 0.0
  %1502 = vmatpush.msra.mxu0 0.0
  %1503 = vmatpush.msra.mxu0 0.0
  %1504 = vmatpush.msra.mxu0 0.0
  %1505 = vmatpush.msra.mxu0 0.0
  %1506 = vmatpush.msra.mxu0 0.0
  %1507 = vmatpush.msra.mxu0 0.0
  %1508 = vmatpush.msra.mxu0 0.0
  %1509 = vmatpush.msra.mxu0 0.0
  %1510 = vmatpush.msra.mxu0 %v1490
  %1511 = vmatmul.f32.gmra.mxu0 %v1493
  %v1512 = vpop.f32.mrf.mxu0
  %v1513 = vadd.f32 0.0, %v1512
  %1514 = vdwg.mxu0
  %1515 = vrot.lane.b32.xlu0 %v1243, 112
  %v1516 = vpop.permute.xlu0 %1515
  %1517 = vrot.lane.b32.xlu0 %v1243, 80
  %v1518 = vpop.permute.xlu0 %1517
  %v1519 = vsel %vm243, %v1516, 0
  %v1521 = vsel %vm243, %v1518, 0
  %1523 = vmatpush.xpose.msra.mxu0 0.0
  %1524 = vmatpush.xpose.msra.mxu0 0.0
  %1525 = vmatpush.xpose.msra.mxu0 0.0
  %1526 = vmatpush.xpose.msra.mxu0 0.0
  %1527 = vmatpush.xpose.msra.mxu0 0.0
  %1528 = vmatpush.xpose.msra.mxu0 0.0
  %1529 = vmatpush.xpose.msra.mxu0 0.0
  %1530 = vmatpush.xpose.msra.mxu0 0.0
  %1531 = vmatpush.xpose.msra.mxu0 0.0
  %1532 = vmatpush.xpose.msra.mxu0 0.0
  %1533 = vmatpush.xpose.msra.mxu0 0.0
  %1534 = vmatpush.xpose.msra.mxu0 0.0
  %1535 = vmatpush.xpose.msra.mxu0 0.0
  %1536 = vmatpush.xpose.msra.mxu0 0.0
  %1537 = vmatpush.xpose.msra.mxu0 0.0
  %1538 = vmatpush.xpose.msra.mxu0 %v1521
  %1539 = vmatmul.f32.gmra.mxu0 %v1519
  %v1540 = vpop.f32.mrf.mxu0
  %v1541 = vadd.f32 %v183, %v1540
  %1542 = vdwg.mxu0
  %1543 = vrot.lane.b32.xlu0 %v1246, 112
  %v1544 = vpop.permute.xlu0 %1543
  %1545 = vrot.lane.b32.xlu0 %v1246, 80
  %v1546 = vpop.permute.xlu0 %1545
  %v1547 = vsel %vm243, %v1544, 0
  %v1549 = vsel %vm243, %v1546, 0
  %1551 = vmatpush.xpose.msra.mxu0 0.0
  %1552 = vmatpush.xpose.msra.mxu0 0.0
  %1553 = vmatpush.xpose.msra.mxu0 0.0
  %1554 = vmatpush.xpose.msra.mxu0 0.0
  %1555 = vmatpush.xpose.msra.mxu0 0.0
  %1556 = vmatpush.xpose.msra.mxu0 0.0
  %1557 = vmatpush.xpose.msra.mxu0 0.0
  %1558 = vmatpush.xpose.msra.mxu0 0.0
  %1559 = vmatpush.xpose.msra.mxu0 0.0
  %1560 = vmatpush.xpose.msra.mxu0 0.0
  %1561 = vmatpush.xpose.msra.mxu0 0.0
  %1562 = vmatpush.xpose.msra.mxu0 0.0
  %1563 = vmatpush.xpose.msra.mxu0 0.0
  %1564 = vmatpush.xpose.msra.mxu0 0.0
  %1565 = vmatpush.xpose.msra.mxu0 0.0
  %1566 = vmatpush.xpose.msra.mxu0 %v1549
  %1567 = vmatmul.f32.gmra.mxu0 %v1547
  %v1568 = vpop.f32.mrf.mxu0
  %v1569 = vadd.f32 %v184, %v1568
  %1570 = vdwg.mxu0
  %1571 = vrot.lane.b32.xlu0 %v1249, 112
  %v1572 = vpop.permute.xlu0 %1571
  %1573 = vrot.lane.b32.xlu0 %v1249, 80
  %v1574 = vpop.permute.xlu0 %1573
  %v1575 = vsel %vm243, %v1572, 0
  %v1577 = vsel %vm243, %v1574, 0
  %1579 = vmatpush.xpose.msra.mxu0 0.0
  %1580 = vmatpush.xpose.msra.mxu0 0.0
  %1581 = vmatpush.xpose.msra.mxu0 0.0
  %1582 = vmatpush.xpose.msra.mxu0 0.0
  %1583 = vmatpush.xpose.msra.mxu0 0.0
  %1584 = vmatpush.xpose.msra.mxu0 0.0
  %1585 = vmatpush.xpose.msra.mxu0 0.0
  %1586 = vmatpush.xpose.msra.mxu0 0.0
  %1587 = vmatpush.xpose.msra.mxu0 0.0
  %1588 = vmatpush.xpose.msra.mxu0 0.0
  %1589 = vmatpush.xpose.msra.mxu0 0.0
  %1590 = vmatpush.xpose.msra.mxu0 0.0
  %1591 = vmatpush.xpose.msra.mxu0 0.0
  %1592 = vmatpush.xpose.msra.mxu0 0.0
  %1593 = vmatpush.xpose.msra.mxu0 0.0
  %1594 = vmatpush.xpose.msra.mxu0 %v1577
  %1595 = vmatmul.f32.gmra.mxu0 %v1575
  %v1596 = vpop.f32.mrf.mxu0
  %v1597 = vadd.f32 %v185, %v1596
  %1598 = vdwg.mxu0
  %1599 = vrot.lane.b32.xlu0 %v1252, 112
  %v1600 = vpop.permute.xlu0 %1599
  %1601 = vrot.lane.b32.xlu0 %v1252, 80
  %v1602 = vpop.permute.xlu0 %1601
  %v1603 = vsel %vm243, %v1600, 0
  %v1605 = vsel %vm243, %v1602, 0
  %1607 = vmatpush.xpose.msra.mxu0 0.0
  %1608 = vmatpush.xpose.msra.mxu0 0.0
  %1609 = vmatpush.xpose.msra.mxu0 0.0
  %1610 = vmatpush.xpose.msra.mxu0 0.0
  %1611 = vmatpush.xpose.msra.mxu0 0.0
  %1612 = vmatpush.xpose.msra.mxu0 0.0
  %1613 = vmatpush.xpose.msra.mxu0 0.0
  %1614 = vmatpush.xpose.msra.mxu0 0.0
  %1615 = vmatpush.xpose.msra.mxu0 0.0
  %1616 = vmatpush.xpose.msra.mxu0 0.0
  %1617 = vmatpush.xpose.msra.mxu0 0.0
  %1618 = vmatpush.xpose.msra.mxu0 0.0
  %1619 = vmatpush.xpose.msra.mxu0 0.0
  %1620 = vmatpush.xpose.msra.mxu0 0.0
  %1621 = vmatpush.xpose.msra.mxu0 0.0
  %1622 = vmatpush.xpose.msra.mxu0 %v1605
  %1623 = vmatmul.f32.gmra.mxu0 %v1603
  %v1624 = vpop.f32.mrf.mxu0
  %v1625 = vadd.f32 %v186, %v1624
  %1626 = vdwg.mxu0
  %v1627 = vsel %vm349, %v1541, -inf
  %1628 = vmax.xlane.f32.xlu0 %v1627
  %v1629 = vpop.xlane.xlu0 %1628
  %v1630 = vsel %vm349, %v1569, -inf
  %1631 = vmax.xlane.f32.xlu0 %v1630
  %v1632 = vpop.xlane.xlu0 %1631
  %v1633 = vsel %vm349, %v1597, -inf
  %1634 = vmax.xlane.f32.xlu0 %v1633
  %v1635 = vpop.xlane.xlu0 %1634
  %v1636 = vsel %vm349, %v1625, -inf
  %1637 = vmax.xlane.f32.xlu0 %v1636
  %v1638 = vpop.xlane.xlu0 %1637
  %v1639 = vsub.f32 %v1541, %v1629
  %v1640 = vsub.f32 %v1569, %v1632
  %v1641 = vsub.f32 %v1597, %v1635
  %v1642 = vsub.f32 %v1625, %v1638
  %v1643 = vmul.f32 %v1639, 1.442695
  %v1644 = vpow.pop %v1643
  %v1645 = vmul.f32 %v1640, 1.442695
  %v1646 = vpow.pop %v1645
  %v1647 = vmul.f32 %v1641, 1.442695
  %v1648 = vpow.pop %v1647
  %v1649 = vmul.f32 %v1642, 1.442695
  %v1650 = vpow.pop %v1649
  %v1651 = vsel %vm349, %v1644, 0.0
  %1652 = vadd.xlane.f32.xlu0 %v1651
  %v1653 = vpop.xlane.xlu0 %1652
  %v1654 = vsel %vm349, %v1646, 0.0
  %1655 = vadd.xlane.f32.xlu0 %v1654
  %v1656 = vpop.xlane.xlu0 %1655
  %v1657 = vsel %vm349, %v1648, 0.0
  %1658 = vadd.xlane.f32.xlu0 %v1657
  %v1659 = vpop.xlane.xlu0 %1658
  %v1660 = vsel %vm349, %v1650, 0.0
  %1661 = vadd.xlane.f32.xlu0 %v1660
  %v1662 = vpop.xlane.xlu0 %1661
  %v1663 = vrcp.pop %v1653
  %v1664 = vrcp.pop %v1656
  %v1665 = vrcp.pop %v1659
  %v1666 = vrcp.pop %v1662
  %v1667 = vmul.f32 %v1644, %v1663
  %v1668 = vmul.f32 %v1646, %v1664
  %v1669 = vmul.f32 %v1648, %v1665
  %v1670 = vmul.f32 %v1650, %v1666
  %1671 = vrot.lane.b32.xlu0 %v1243, 48
  %v1672 = vpop.permute.xlu0 %1671
  %v1675 = vsel %vm349, %v1667, 0
  %1677 = vmatpush.msra.mxu0 0.0
  %1678 = vmatpush.msra.mxu0 0.0
  %1679 = vmatpush.msra.mxu0 0.0
  %1680 = vmatpush.msra.mxu0 0.0
  %1681 = vmatpush.msra.mxu0 0.0
  %1682 = vmatpush.msra.mxu0 0.0
  %1683 = vmatpush.msra.mxu0 0.0
  %1684 = vmatpush.msra.mxu0 0.0
  %1685 = vmatpush.msra.mxu0 0.0
  %1686 = vmatpush.msra.mxu0 0.0
  %1687 = vmatpush.msra.mxu0 0.0
  %1688 = vmatpush.msra.mxu0 0.0
  %1689 = vmatpush.msra.mxu0 0.0
  %1690 = vmatpush.msra.mxu0 0.0
  %1691 = vmatpush.msra.mxu0 0.0
  %1692 = vmatpush.msra.mxu0 %v1672
  %1693 = vmatmul.f32.gmra.mxu0 %v1675
  %v1694 = vpop.f32.mrf.mxu0
  %v1695 = vadd.f32 0.0, %v1694
  %1696 = vdwg.mxu0
  %1697 = vrot.lane.b32.xlu0 %v1246, 48
  %v1698 = vpop.permute.xlu0 %1697
  %v1701 = vsel %vm349, %v1668, 0
  %1703 = vmatpush.msra.mxu0 0.0
  %1704 = vmatpush.msra.mxu0 0.0
  %1705 = vmatpush.msra.mxu0 0.0
  %1706 = vmatpush.msra.mxu0 0.0
  %1707 = vmatpush.msra.mxu0 0.0
  %1708 = vmatpush.msra.mxu0 0.0
  %1709 = vmatpush.msra.mxu0 0.0
  %1710 = vmatpush.msra.mxu0 0.0
  %1711 = vmatpush.msra.mxu0 0.0
  %1712 = vmatpush.msra.mxu0 0.0
  %1713 = vmatpush.msra.mxu0 0.0
  %1714 = vmatpush.msra.mxu0 0.0
  %1715 = vmatpush.msra.mxu0 0.0
  %1716 = vmatpush.msra.mxu0 0.0
  %1717 = vmatpush.msra.mxu0 0.0
  %1718 = vmatpush.msra.mxu0 %v1698
  %1719 = vmatmul.f32.gmra.mxu0 %v1701
  %v1720 = vpop.f32.mrf.mxu0
  %v1721 = vadd.f32 0.0, %v1720
  %1722 = vdwg.mxu0
  %1723 = vrot.lane.b32.xlu0 %v1249, 48
  %v1724 = vpop.permute.xlu0 %1723
  %v1727 = vsel %vm349, %v1669, 0
  %1729 = vmatpush.msra.mxu0 0.0
  %1730 = vmatpush.msra.mxu0 0.0
  %1731 = vmatpush.msra.mxu0 0.0
  %1732 = vmatpush.msra.mxu0 0.0
  %1733 = vmatpush.msra.mxu0 0.0
  %1734 = vmatpush.msra.mxu0 0.0
  %1735 = vmatpush.msra.mxu0 0.0
  %1736 = vmatpush.msra.mxu0 0.0
  %1737 = vmatpush.msra.mxu0 0.0
  %1738 = vmatpush.msra.mxu0 0.0
  %1739 = vmatpush.msra.mxu0 0.0
  %1740 = vmatpush.msra.mxu0 0.0
  %1741 = vmatpush.msra.mxu0 0.0
  %1742 = vmatpush.msra.mxu0 0.0
  %1743 = vmatpush.msra.mxu0 0.0
  %1744 = vmatpush.msra.mxu0 %v1724
  %1745 = vmatmul.f32.gmra.mxu0 %v1727
  %v1746 = vpop.f32.mrf.mxu0
  %v1747 = vadd.f32 0.0, %v1746
  %1748 = vdwg.mxu0
  %1749 = vrot.lane.b32.xlu0 %v1252, 48
  %v1750 = vpop.permute.xlu0 %1749
  %v1753 = vsel %vm349, %v1670, 0
  %1755 = vmatpush.msra.mxu0 0.0
  %1756 = vmatpush.msra.mxu0 0.0
  %1757 = vmatpush.msra.mxu0 0.0
  %1758 = vmatpush.msra.mxu0 0.0
  %1759 = vmatpush.msra.mxu0 0.0
  %1760 = vmatpush.msra.mxu0 0.0
  %1761 = vmatpush.msra.mxu0 0.0
  %1762 = vmatpush.msra.mxu0 0.0
  %1763 = vmatpush.msra.mxu0 0.0
  %1764 = vmatpush.msra.mxu0 0.0
  %1765 = vmatpush.msra.mxu0 0.0
  %1766 = vmatpush.msra.mxu0 0.0
  %1767 = vmatpush.msra.mxu0 0.0
  %1768 = vmatpush.msra.mxu0 0.0
  %1769 = vmatpush.msra.mxu0 0.0
  %1770 = vmatpush.msra.mxu0 %v1750
  %1771 = vmatmul.f32.gmra.mxu0 %v1753
  %v1772 = vpop.f32.mrf.mxu0
  %v1773 = vadd.f32 0.0, %v1772
  %1774 = vdwg.mxu0
  %v1776 = vsel %vm243, %v1695, 0
  %v1779 = vsel %vm243, %v1721, 0
  %v1782 = vsel %vm243, %v1747, 0
  %v1785 = vsel %vm243, %v1773, 0
  %1787 = vmatpush.msra.mxu0 0.0
  %1788 = vmatpush.msra.mxu0 0.0
  %1789 = vmatpush.msra.mxu0 0.0
  %1790 = vmatpush.msra.mxu0 0.0
  %1791 = vmatpush.msra.mxu0 0.0
  %1792 = vmatpush.msra.mxu0 0.0
  %1793 = vmatpush.msra.mxu0 0.0
  %1794 = vmatpush.msra.mxu0 0.0
  %1795 = vmatpush.msra.mxu0 0.0
  %1796 = vmatpush.msra.mxu0 0.0
  %1797 = vmatpush.msra.mxu0 0.0
  %1798 = vmatpush.msra.mxu0 0.0
  %1799 = vmatpush.msra.mxu0 0.0
  %1800 = vmatpush.msra.mxu0 0.0
  %1801 = vmatpush.msra.mxu0 %v1258
  %1802 = vmatpush.msra.mxu0 %v1257
  %1803 = vmatmul.f32.gmra.mxu0 %v1776
  %v1804 = vpop.f32.mrf.mxu0
  %v1805 = vadd.f32 0.0, %v1804
  %1806 = vmatmul.f32.gmra.mxu0 %v1779
  %v1807 = vpop.f32.mrf.mxu0
  %v1808 = vadd.f32 0.0, %v1807
  %1809 = vmatmul.f32.gmra.mxu0 %v1782
  %v1810 = vpop.f32.mrf.mxu0
  %v1811 = vadd.f32 0.0, %v1810
  %1812 = vmatmul.f32.gmra.mxu0 %v1785
  %v1813 = vpop.f32.mrf.mxu0
  %v1814 = vadd.f32 0.0, %v1813
  %1815 = vdwg.mxu0
  %v1817 = vsel %vm243, %v1435, 0
  %v1820 = vsel %vm243, %v1461, 0
  %v1823 = vsel %vm243, %v1487, 0
  %v1826 = vsel %vm243, %v1513, 0
  %1828 = vmatpush.msra.mxu0 0.0
  %1829 = vmatpush.msra.mxu0 0.0
  %1830 = vmatpush.msra.mxu0 0.0
  %1831 = vmatpush.msra.mxu0 0.0
  %1832 = vmatpush.msra.mxu0 0.0
  %1833 = vmatpush.msra.mxu0 0.0
  %1834 = vmatpush.msra.mxu0 0.0
  %1835 = vmatpush.msra.mxu0 0.0
  %1836 = vmatpush.msra.mxu0 0.0
  %1837 = vmatpush.msra.mxu0 0.0
  %1838 = vmatpush.msra.mxu0 0.0
  %1839 = vmatpush.msra.mxu0 0.0
  %1840 = vmatpush.msra.mxu0 0.0
  %1841 = vmatpush.msra.mxu0 0.0
  %1842 = vmatpush.msra.mxu0 %v1256
  %1843 = vmatpush.msra.mxu0 %v1255
  %1844 = vmatmul.f32.gmra.mxu0 %v1817
  %v1845 = vpop.f32.mrf.mxu0
  %v1846 = vadd.f32 %v1805, %v1845
  %1847 = vmatmul.f32.gmra.mxu0 %v1820
  %v1848 = vpop.f32.mrf.mxu0
  %v1849 = vadd.f32 %v1808, %v1848
  %1850 = vmatmul.f32.gmra.mxu0 %v1823
  %v1851 = vpop.f32.mrf.mxu0
  %v1852 = vadd.f32 %v1811, %v1851
  %1853 = vmatmul.f32.gmra.mxu0 %v1826
  %v1854 = vpop.f32.mrf.mxu0
  %v1855 = vadd.f32 %v1814, %v1854
  %1856 = vdwg.mxu0
  %s1857 = scalar_lea.vmem %s7, 1
  %v1858 = vld [vmem:[%s1857] sm:$0x1]
  %v1860 = vperm.slane %v1858, 0
  %v1862 = vadd.f32 %v1846, %v1860
  %v1863 = vadd.f32 %v1849, %v1860
  %v1864 = vadd.f32 %v1852, %v1860
  %v1865 = vadd.f32 %v1855, %v1860
  %v1866 = vadd.f32 %v1862, %v1199
  %v1867 = vadd.f32 %v1863, %v1200
  %v1868 = vadd.f32 %v1864, %v1201
  %v1869 = vadd.f32 %v1865, %v1202
  %s1870 = scalar_lea.vmem %s8, 1
  %v1871 = vld [vmem:[%s1870] sm:$0x1]
  %s1872 = scalar_lea.vmem %s9, 1
  %v1873 = vld [vmem:[%s1872] sm:$0x1]
  %v1874 = vsel %vm73, %v1866, 0.0
  %1875 = vadd.xlane.f32.xlu0 %v1874
  %v1876 = vpop.xlane.xlu0 %1875
  %v1877 = vsel %vm73, %v1867, 0.0
  %1878 = vadd.xlane.f32.xlu0 %v1877
  %v1879 = vpop.xlane.xlu0 %1878
  %v1880 = vsel %vm73, %v1868, 0.0
  %1881 = vadd.xlane.f32.xlu0 %v1880
  %v1882 = vpop.xlane.xlu0 %1881
  %v1883 = vsel %vm73, %v1869, 0.0
  %1884 = vadd.xlane.f32.xlu0 %v1883
  %v1885 = vpop.xlane.xlu0 %1884
  %v1886 = vmul.f32 %v1876, %v92
  %v1887 = vmul.f32 %v1879, %v92
  %v1888 = vmul.f32 %v1882, %v92
  %v1889 = vmul.f32 %v1885, %v92
  %v1890 = vsub.f32 %v1866, %v1886
  %v1891 = vsub.f32 %v1867, %v1887
  %v1892 = vsub.f32 %v1868, %v1888
  %v1893 = vsub.f32 %v1869, %v1889
  %v1894 = vmul.f32 %v1890, %v1890
  %v1895 = vmul.f32 %v1891, %v1891
  %v1896 = vmul.f32 %v1892, %v1892
  %v1897 = vmul.f32 %v1893, %v1893
  %v1898 = vsel %vm73, %v1894, 0.0
  %1899 = vadd.xlane.f32.xlu0 %v1898
  %v1900 = vpop.xlane.xlu0 %1899
  %v1901 = vsel %vm73, %v1895, 0.0
  %1902 = vadd.xlane.f32.xlu0 %v1901
  %v1903 = vpop.xlane.xlu0 %1902
  %v1904 = vsel %vm73, %v1896, 0.0
  %1905 = vadd.xlane.f32.xlu0 %v1904
  %v1906 = vpop.xlane.xlu0 %1905
  %v1907 = vsel %vm73, %v1897, 0.0
  %1908 = vadd.xlane.f32.xlu0 %v1907
  %v1909 = vpop.xlane.xlu0 %1908
  %v1910 = vmul.f32 %v1900, %v92
  %v1911 = vmul.f32 %v1903, %v92
  %v1912 = vmul.f32 %v1906, %v92
  %v1913 = vmul.f32 %v1909, %v92
  %v1914 = vadd.f32 %v1910, 1e-05
  %v1915 = vadd.f32 %v1911, 1e-05
  %v1916 = vadd.f32 %v1912, 1e-05
  %v1917 = vadd.f32 %v1913, 1e-05
  %v1918 = vrsqrt.pop %v1914
  %v1919 = vmul.f32 %v1918, %v1914
  %v1920 = vmul.f32 %v1919, %v1918
  %v1921 = vmul.f32 0.5, %v1920
  %v1922 = vsub.f32 1.5, %v1921
  %v1923 = vmul.f32 %v1918, %v1922
  %vm1924 = vweird.f32 %v1914
  %vm1925 = vweird.f32 %v1918
  %vm1926 = vmor %vm1924, %vm1925
  %v1927 = vsel %vm1926, %v1918, %v1923
  %v1928 = vrsqrt.pop %v1915
  %v1929 = vmul.f32 %v1928, %v1915
  %v1930 = vmul.f32 %v1929, %v1928
  %v1931 = vmul.f32 0.5, %v1930
  %v1932 = vsub.f32 1.5, %v1931
  %v1933 = vmul.f32 %v1928, %v1932
  %vm1934 = vweird.f32 %v1915
  %vm1935 = vweird.f32 %v1928
  %vm1936 = vmor %vm1934, %vm1935
  %v1937 = vsel %vm1936, %v1928, %v1933
  %v1938 = vrsqrt.pop %v1916
  %v1939 = vmul.f32 %v1938, %v1916
  %v1940 = vmul.f32 %v1939, %v1938
  %v1941 = vmul.f32 0.5, %v1940
  %v1942 = vsub.f32 1.5, %v1941
  %v1943 = vmul.f32 %v1938, %v1942
  %vm1944 = vweird.f32 %v1916
  %vm1945 = vweird.f32 %v1938
  %vm1946 = vmor %vm1944, %vm1945
  %v1947 = vsel %vm1946, %v1938, %v1943
  %v1948 = vrsqrt.pop %v1917
  %v1949 = vmul.f32 %v1948, %v1917
  %v1950 = vmul.f32 %v1949, %v1948
  %v1951 = vmul.f32 0.5, %v1950
  %v1952 = vsub.f32 1.5, %v1951
  %v1953 = vmul.f32 %v1948, %v1952
  %vm1954 = vweird.f32 %v1917
  %vm1955 = vweird.f32 %v1948
  %vm1956 = vmor %vm1954, %vm1955
  %v1957 = vsel %vm1956, %v1948, %v1953
  %v1958 = vmul.f32 %v1890, %v1927
  %v1959 = vmul.f32 %v1891, %v1937
  %v1960 = vmul.f32 %v1892, %v1947
  %v1961 = vmul.f32 %v1893, %v1957
  %v1963 = vperm.slane %v1871, 0
  %v1965 = vmul.f32 %v1958, %v1963
  %v1966 = vmul.f32 %v1959, %v1963
  %v1967 = vmul.f32 %v1960, %v1963
  %v1968 = vmul.f32 %v1961, %v1963
  %v1970 = vperm.slane %v1873, 0
  %v1972 = vadd.f32 %v1965, %v1970
  %v1973 = vadd.f32 %v1966, %v1970
  %v1974 = vadd.f32 %v1967, %v1970
  %v1975 = vadd.f32 %v1968, %v1970
  %s1976 = scalar_lea.vmem %s10, 32
  %v1977 = vld [vmem:[%s1976] sm:$0xff]
  %v1978 = vld [vmem:[%s1976 + $0x8] sm:$0xff]
  %v1979 = vld [vmem:[%s1976 + $0x10] sm:$0xff]
  %v1980 = vld [vmem:[%s1976 + $0x18] sm:$0xff]
  %s1981 = scalar_lea.vmem %s11, 1
  %v1982 = vld [vmem:[%s1981] sm:$0x1]
  %v1984 = vperm.slane %v1982, 0
  %v1987 = vsel %vm73, %v1972, 0
  %v1990 = vsel %vm73, %v1973, 0
  %v1993 = vsel %vm73, %v1974, 0
  %v1996 = vsel %vm73, %v1975, 0
  %1998 = vmatpush.msra.mxu0 0.0
  %1999 = vmatpush.msra.mxu0 0.0
  %2000 = vmatpush.msra.mxu0 0.0
  %2001 = vmatpush.msra.mxu0 0.0
  %2002 = vmatpush.msra.mxu0 0.0
  %2003 = vmatpush.msra.mxu0 0.0
  %2004 = vmatpush.msra.mxu0 0.0
  %2005 = vmatpush.msra.mxu0 0.0
  %2006 = vmatpush.msra.mxu0 0.0
  %2007 = vmatpush.msra.mxu0 0.0
  %2008 = vmatpush.msra.mxu0 0.0
  %2009 = vmatpush.msra.mxu0 0.0
  %2010 = vmatpush.msra.mxu0 %v1980
  %2011 = vmatpush.msra.mxu0 %v1979
  %2012 = vmatpush.msra.mxu0 %v1978
  %2013 = vmatpush.msra.mxu0 %v1977
  %2014 = vmatmul.f32.gmra.mxu0 %v1987
  %v2015 = vpop.f32.mrf.mxu0
  %v2016 = vadd.f32 %v1984, %v2015
  %2017 = vmatmul.f32.gmra.mxu0 %v1990
  %v2018 = vpop.f32.mrf.mxu0
  %v2019 = vadd.f32 %v1984, %v2018
  %2020 = vmatmul.f32.gmra.mxu0 %v1993
  %v2021 = vpop.f32.mrf.mxu0
  %v2022 = vadd.f32 %v1984, %v2021
  %2023 = vmatmul.f32.gmra.mxu0 %v1996
  %v2024 = vpop.f32.mrf.mxu0
  %v2025 = vadd.f32 %v1984, %v2024
  %2026 = vdwg.mxu0
  %v2027 = vmul.f32 %v2016, %v2016
  %v2028 = vmul.f32 %v2019, %v2019
  %v2029 = vmul.f32 %v2022, %v2022
  %v2030 = vmul.f32 %v2025, %v2025
  %v2031 = vmul.f32 %v2016, %v2027
  %v2032 = vmul.f32 %v2019, %v2028
  %v2033 = vmul.f32 %v2022, %v2029
  %v2034 = vmul.f32 %v2025, %v2030
  %v2035 = vmul.f32 %v2031, 0.044715
  %v2036 = vmul.f32 %v2032, 0.044715
  %v2037 = vmul.f32 %v2033, 0.044715
  %v2038 = vmul.f32 %v2034, 0.044715
  %v2039 = vadd.f32 %v2016, %v2035
  %v2040 = vadd.f32 %v2019, %v2036
  %v2041 = vadd.f32 %v2022, %v2037
  %v2042 = vadd.f32 %v2025, %v2038
  %v2043 = vmul.f32 %v2039, 0.7978846
  %v2044 = vmul.f32 %v2040, 0.7978846
  %v2045 = vmul.f32 %v2041, 0.7978846
  %v2046 = vmul.f32 %v2042, 0.7978846
  %v2047 = vtanh.pop %v2043
  %v2048 = vtanh.pop %v2044
  %v2049 = vtanh.pop %v2045
  %v2050 = vtanh.pop %v2046
  %v2051 = vadd.f32 %v2047, 1.0
  %v2052 = vadd.f32 %v2048, 1.0
  %v2053 = vadd.f32 %v2049, 1.0
  %v2054 = vadd.f32 %v2050, 1.0
  %v2055 = vmul.f32 %v2051, 0.5
  %v2056 = vmul.f32 %v2052, 0.5
  %v2057 = vmul.f32 %v2053, 0.5
  %v2058 = vmul.f32 %v2054, 0.5
  %v2059 = vmul.f32 %v2016, %v2055
  %v2060 = vmul.f32 %v2019, %v2056
  %v2061 = vmul.f32 %v2022, %v2057
  %v2062 = vmul.f32 %v2025, %v2058
  %s2063 = scalar_lea.vmem %s12, 64
  %v2064 = vld [vmem:[%s2063] sm:$0xff]
  %v2065 = vld [vmem:[%s2063 + $0x8] sm:$0xff]
  %v2066 = vld [vmem:[%s2063 + $0x10] sm:$0xff]
  %v2067 = vld [vmem:[%s2063 + $0x18] sm:$0xff]
  %v2068 = vld [vmem:[%s2063 + $0x20] sm:$0xff]
  %v2069 = vld [vmem:[%s2063 + $0x28] sm:$0xff]
  %v2070 = vld [vmem:[%s2063 + $0x30] sm:$0xff]
  %v2071 = vld [vmem:[%s2063 + $0x38] sm:$0xff]
  %s2072 = scalar_lea.vmem %s13, 1
  %v2073 = vld [vmem:[%s2072] sm:$0x1]
  %v2075 = vperm.slane %v2073, 0
  %v2078 = vsel %vm1053, %v2059, 0
  %v2081 = vsel %vm1053, %v2060, 0
  %v2084 = vsel %vm1053, %v2061, 0
  %v2087 = vsel %vm1053, %v2062, 0
  %2089 = vmatpush.msra.mxu0 0.0
  %2090 = vmatpush.msra.mxu0 0.0
  %2091 = vmatpush.msra.mxu0 0.0
  %2092 = vmatpush.msra.mxu0 0.0
  %2093 = vmatpush.msra.mxu0 0.0
  %2094 = vmatpush.msra.mxu0 0.0
  %2095 = vmatpush.msra.mxu0 0.0
  %2096 = vmatpush.msra.mxu0 0.0
  %2097 = vmatpush.msra.mxu0 %v2071
  %2098 = vmatpush.msra.mxu0 %v2070
  %2099 = vmatpush.msra.mxu0 %v2069
  %2100 = vmatpush.msra.mxu0 %v2068
  %2101 = vmatpush.msra.mxu0 %v2067
  %2102 = vmatpush.msra.mxu0 %v2066
  %2103 = vmatpush.msra.mxu0 %v2065
  %2104 = vmatpush.msra.mxu0 %v2064
  %2105 = vmatmul.f32.gmra.mxu0 %v2078
  %v2106 = vpop.f32.mrf.mxu0
  %v2107 = vadd.f32 %v2075, %v2106
  %2108 = vmatmul.f32.gmra.mxu0 %v2081
  %v2109 = vpop.f32.mrf.mxu0
  %v2110 = vadd.f32 %v2075, %v2109
  %2111 = vmatmul.f32.gmra.mxu0 %v2084
  %v2112 = vpop.f32.mrf.mxu0
  %v2113 = vadd.f32 %v2075, %v2112
  %2114 = vmatmul.f32.gmra.mxu0 %v2087
  %v2115 = vpop.f32.mrf.mxu0
  %v2116 = vadd.f32 %v2075, %v2115
  %2117 = vdwg.mxu0
  %v2118 = vadd.f32 %v2107, %v1972
  %v2119 = vadd.f32 %v2110, %v1973
  %v2120 = vadd.f32 %v2113, %v1974
  %v2121 = vadd.f32 %v2116, %v1975
  %s2122 = scalar_lea.vmem %s14, 1
  %v2123 = vld [vmem:[%s2122] sm:$0x1]
  %s2124 = scalar_lea.vmem %s15, 1
  %v2125 = vld [vmem:[%s2124] sm:$0x1]
  %v2126 = vsel %vm73, %v2118, 0.0
  %2127 = vadd.xlane.f32.xlu0 %v2126
  %v2128 = vpop.xlane.xlu0 %2127
  %v2129 = vsel %vm73, %v2119, 0.0
  %2130 = vadd.xlane.f32.xlu0 %v2129
  %v2131 = vpop.xlane.xlu0 %2130
  %v2132 = vsel %vm73, %v2120, 0.0
  %2133 = vadd.xlane.f32.xlu0 %v2132
  %v2134 = vpop.xlane.xlu0 %2133
  %v2135 = vsel %vm73, %v2121, 0.0
  %2136 = vadd.xlane.f32.xlu0 %v2135
  %v2137 = vpop.xlane.xlu0 %2136
  %v2138 = vmul.f32 %v2128, %v92
  %v2139 = vmul.f32 %v2131, %v92
  %v2140 = vmul.f32 %v2134, %v92
  %v2141 = vmul.f32 %v2137, %v92
  %v2142 = vsub.f32 %v2118, %v2138
  %v2143 = vsub.f32 %v2119, %v2139
  %v2144 = vsub.f32 %v2120, %v2140
  %v2145 = vsub.f32 %v2121, %v2141
  %v2146 = vmul.f32 %v2142, %v2142
  %v2147 = vmul.f32 %v2143, %v2143
  %v2148 = vmul.f32 %v2144, %v2144
  %v2149 = vmul.f32 %v2145, %v2145
  %v2150 = vsel %vm73, %v2146, 0.0
  %2151 = vadd.xlane.f32.xlu0 %v2150
  %v2152 = vpop.xlane.xlu0 %2151
  %v2153 = vsel %vm73, %v2147, 0.0
  %2154 = vadd.xlane.f32.xlu0 %v2153
  %v2155 = vpop.xlane.xlu0 %2154
  %v2156 = vsel %vm73, %v2148, 0.0
  %2157 = vadd.xlane.f32.xlu0 %v2156
  %v2158 = vpop.xlane.xlu0 %2157
  %v2159 = vsel %vm73, %v2149, 0.0
  %2160 = vadd.xlane.f32.xlu0 %v2159
  %v2161 = vpop.xlane.xlu0 %2160
  %v2162 = vmul.f32 %v2152, %v92
  %v2163 = vmul.f32 %v2155, %v92
  %v2164 = vmul.f32 %v2158, %v92
  %v2165 = vmul.f32 %v2161, %v92
  %v2166 = vadd.f32 %v2162, 1e-05
  %v2167 = vadd.f32 %v2163, 1e-05
  %v2168 = vadd.f32 %v2164, 1e-05
  %v2169 = vadd.f32 %v2165, 1e-05
  %v2170 = vrsqrt.pop %v2166
  %v2171 = vmul.f32 %v2170, %v2166
  %v2172 = vmul.f32 %v2171, %v2170
  %v2173 = vmul.f32 0.5, %v2172
  %v2174 = vsub.f32 1.5, %v2173
  %v2175 = vmul.f32 %v2170, %v2174
  %vm2176 = vweird.f32 %v2166
  %vm2177 = vweird.f32 %v2170
  %vm2178 = vmor %vm2176, %vm2177
  %v2179 = vsel %vm2178, %v2170, %v2175
  %v2180 = vrsqrt.pop %v2167
  %v2181 = vmul.f32 %v2180, %v2167
  %v2182 = vmul.f32 %v2181, %v2180
  %v2183 = vmul.f32 0.5, %v2182
  %v2184 = vsub.f32 1.5, %v2183
  %v2185 = vmul.f32 %v2180, %v2184
  %vm2186 = vweird.f32 %v2167
  %vm2187 = vweird.f32 %v2180
  %vm2188 = vmor %vm2186, %vm2187
  %v2189 = vsel %vm2188, %v2180, %v2185
  %v2190 = vrsqrt.pop %v2168
  %v2191 = vmul.f32 %v2190, %v2168
  %v2192 = vmul.f32 %v2191, %v2190
  %v2193 = vmul.f32 0.5, %v2192
  %v2194 = vsub.f32 1.5, %v2193
  %v2195 = vmul.f32 %v2190, %v2194
  %vm2196 = vweird.f32 %v2168
  %vm2197 = vweird.f32 %v2190
  %vm2198 = vmor %vm2196, %vm2197
  %v2199 = vsel %vm2198, %v2190, %v2195
  %v2200 = vrsqrt.pop %v2169
  %v2201 = vmul.f32 %v2200, %v2169
  %v2202 = vmul.f32 %v2201, %v2200
  %v2203 = vmul.f32 0.5, %v2202
  %v2204 = vsub.f32 1.5, %v2203
  %v2205 = vmul.f32 %v2200, %v2204
  %vm2206 = vweird.f32 %v2169
  %vm2207 = vweird.f32 %v2200
  %vm2208 = vmor %vm2206, %vm2207
  %v2209 = vsel %vm2208, %v2200, %v2205
  %v2210 = vmul.f32 %v2142, %v2179
  %v2211 = vmul.f32 %v2143, %v2189
  %v2212 = vmul.f32 %v2144, %v2199
  %v2213 = vmul.f32 %v2145, %v2209
  %v2215 = vperm.slane %v2123, 0
  %v2217 = vmul.f32 %v2210, %v2215
  %v2218 = vmul.f32 %v2211, %v2215
  %v2219 = vmul.f32 %v2212, %v2215
  %v2220 = vmul.f32 %v2213, %v2215
  %v2222 = vperm.slane %v2125, 0
  %v2224 = vadd.f32 %v2217, %v2222
  %v2225 = vadd.f32 %v2218, %v2222
  %v2226 = vadd.f32 %v2219, %v2222
  %v2227 = vadd.f32 %v2220, %v2222
  %v2228 = vld [vmem:[%s16] sm:$0xff]
  %v2229 = vld [vmem:[%s16 + $0x8] sm:$0xff]
  %v2230 = vld [vmem:[%s16 + $0x10] sm:$0xff]
  %v2231 = vld [vmem:[%s16 + $0x18] sm:$0xff]
  %v2232 = vld [vmem:[%s17] sm:$0x1]
  %v2234 = vperm.slane %v2232, 0
  %v2240 = vrot.slane %v2225, 7
  %vm2241 = vcmask 1041409
  %v2242 = vsel %vm2241, %v2240, %v2224
  %v2243 = vrot.slane %v2226, 6
  %vm2244 = vcmask 1042434
  %v2245 = vsel %vm2244, %v2243, %v2242
  %v2246 = vrot.slane %v2227, 5
  %vm2247 = vcmask 1043459
  %v2248 = vsel %vm2247, %v2246, %v2245
  %v2249 = vsel %vm73, %v2248, 0
  %2251 = vmatpush.msra.mxu0 0.0
  %2252 = vmatpush.msra.mxu0 0.0
  %2253 = vmatpush.msra.mxu0 0.0
  %2254 = vmatpush.msra.mxu0 0.0
  %2255 = vmatpush.msra.mxu0 0.0
  %2256 = vmatpush.msra.mxu0 0.0
  %2257 = vmatpush.msra.mxu0 0.0
  %2258 = vmatpush.msra.mxu0 0.0
  %2259 = vmatpush.msra.mxu0 0.0
  %2260 = vmatpush.msra.mxu0 0.0
  %2261 = vmatpush.msra.mxu0 0.0
  %2262 = vmatpush.msra.mxu0 0.0
  %2263 = vmatpush.msra.mxu0 %v2231
  %2264 = vmatpush.msra.mxu0 %v2230
  %2265 = vmatpush.msra.mxu0 %v2229
  %2266 = vmatpush.msra.mxu0 %v2228
  %2267 = vmatmul.f32.gmra.mxu0 %v2249
  %v2268 = vpop.f32.mrf.mxu0
  %v2269 = vadd.f32 %v2234, %v2268
  %2270 = vdwg.mxu0
  %v2271 = vtanh.pop %v2269
  %v2272 = vld [vmem:[%s18] sm:$0xff]
  %v2273 = vld [vmem:[%s18 + $0x8] sm:$0xff]
  %v2274 = vld [vmem:[%s18 + $0x10] sm:$0xff]
  %v2275 = vld [vmem:[%s18 + $0x18] sm:$0xff]
  %v2276 = vld [vmem:[#allocation2] sm:$0x1]
  %v2278 = vperm.slane %v2276, 0
  %v2281 = vsel %vm73, %v2271, 0
  %2283 = vmatpush.msra.mxu0 0.0
  %2284 = vmatpush.msra.mxu0 0.0
  %2285 = vmatpush.msra.mxu0 0.0
  %2286 = vmatpush.msra.mxu0 0.0
  %2287 = vmatpush.msra.mxu0 0.0
  %2288 = vmatpush.msra.mxu0 0.0
  %2289 = vmatpush.msra.mxu0 0.0
  %2290 = vmatpush.msra.mxu0 0.0
  %2291 = vmatpush.msra.mxu0 0.0
  %2292 = vmatpush.msra.mxu0 0.0
  %2293 = vmatpush.msra.mxu0 0.0
  %2294 = vmatpush.msra.mxu0 0.0
  %2295 = vmatpush.msra.mxu0 %v2275
  %2296 = vmatpush.msra.mxu0 %v2274
  %2297 = vmatpush.msra.mxu0 %v2273
  %2298 = vmatpush.msra.mxu0 %v2272
  %2299 = vmatmul.f32.gmra.mxu0 %v2281
  %v2300 = vpop.f32.mrf.mxu0
  %v2301 = vadd.f32 %v2278, %v2300
  %2302 = vdwg.mxu0
  %vm2303 = vcmask 3072
  %2304 = vst.msk [vmem:[%s20] sm:$0xf] %vm2303, %v2301
  // Predicated region
  $region82: #{roberta_multiple_choice.1} parent=0 // pred_check
    _
  $region83: #{roberta_multiple_choice.1} parent=0 // pred_check_branch
    %2306 = sbr.rel (0) target = $region85
  $region84: #{roberta_multiple_choice.1} parent=0 // pred_region
    _
  $region85: #{roberta_multiple_choice.1} parent=0 // pred_fallthru
    _
  // Predicated region
  $region86: #{roberta_multiple_choice.1} parent=0 // pred_check
    _
  $region87: #{roberta_multiple_choice.1} parent=0 // pred_check_branch
    %2308 = sbr.rel (0) target = $region89
  $region88: #{roberta_multiple_choice.1} parent=0 // pred_region
    _
  $region89: #{roberta_multiple_choice.1} parent=0 // pred_fallthru
    _

</llo_original>
